<compile_context>
chip_gen: v6e
topology: v6e:2x2x1
jax: 0.10.0
libtpu: 0.0.40
codegen_flags: <defaults>
</compile_context>

<pallas_src>
import math
from functools import partial

import jax
import jax.numpy as jnp
from jax import lax
from jax.experimental import pallas as pl
from jax.experimental.pallas import tpu as pltpu


# ---------------------------------------------------------------------------
# Fused SK forward kernel (one batch element per grid step), (C, HW) layout.
# ---------------------------------------------------------------------------
def _make_sk_kernel(H, W, Cin, Cmid, Cout, L, fuse):
    HW = H * W

    def kernel(*refs):
        if fuse:
            (x_ref, y_ref, w1_ref, s1_ref, b1_ref,
             fcw_ref, fcs_ref, fcb_ref, wcat_ref, bcat_ref,
             w2_ref, s2_ref, b2_ref,
             yout_ref, xout_ref) = refs
        else:
            (x_ref, w1_ref, s1_ref, b1_ref,
             w2_ref, s2_ref, b2_ref,
             yout_ref, xout_ref) = refs

        # ---- conv1: 1x1 conv + folded BN, (Cmid,Cin)@(Cin,HW) on the MXU ----
        x = x_ref[0]                                          # (Cin, HW)
        x1 = jnp.dot(w1_ref[...], x, preferred_element_type=jnp.float32)
        x1 = x1 * s1_ref[...] + b1_ref[...]                   # (Cmid, HW)

        # ---- SK attention fuse (VPU/XLU only, no tiny MXU matmuls) ---------
        if fuse:
            yb = y_ref[0]                                     # (Cmid, HW)
            gap = jnp.mean(x1 + yb, axis=1, keepdims=True)    # (Cmid, 1) GAP
            # fc (or fc1): z[l] = sum_c fc_w[c,l] * gap[c]  -> (1, L)
            z = jnp.sum(fcw_ref[...] * gap, axis=0, keepdims=True)
            z = jnp.maximum(z * fcs_ref[...] + fcb_ref[...], 0.0)
            # fcs[0]/fcs[1] fused: a[j] = sum_l wcat[j,l] * z[l]  -> (2*Cmid, 1)
            a = jnp.sum(wcat_ref[...] * z, axis=1, keepdims=True) + bcat_ref[...]
            a0 = a[:Cmid]
            a1 = a[Cmid:]
            m = jnp.maximum(a0, a1)                           # stable 2-way softmax
            e0 = jnp.exp(a0 - m)
            e1 = jnp.exp(a1 - m)
            inv = pl.reciprocal(e0 + e1, approx=True)         # EUP, not VPU divide
            xf = x1 * (e0 * inv) + yb * (e1 * inv)            # (Cmid, HW)
        else:
            xf = x1

        xout_ref[0] = xf                                      # module's `x` output

        # ---- conv2: 3x3 conv (pad 1) + folded BN ---------------------------
        # Row/column shifts with zero fill = lane rolls (XLU) + iota masks (VPU).
        lane = lax.broadcasted_iota(jnp.int32, (1, HW), 1)    # flat pixel index
        col = lane % W
        m_up = (lane >= W).astype(jnp.float32)                # row h-1 exists
        m_dn = (lane < HW - W).astype(jnp.float32)            # row h+1 exists
        m_l = (col > 0).astype(jnp.float32)                   # col w-1 exists
        m_r = (col < W - 1).astype(jnp.float32)               # col w+1 exists

        r_up = pltpu.roll(xf, shift=W, axis=1) * m_up         # x[:, h-1, w]
        r_dn = pltpu.roll(xf, shift=HW - W, axis=1) * m_dn    # x[:, h+1, w]

        # One K=96, N=HW channel-mix matmul instead of nine K=32 matmuls.
        xcat = jnp.concatenate([r_up, xf, r_dn], axis=0)      # (3*Cmid, HW)
        cmix = jnp.dot(w2_ref[...], xcat,
                       preferred_element_type=jnp.float32)    # (3*Cout, HW)
        c_l = cmix[0:Cout]            # taps at column w-1
        c_c = cmix[Cout:2 * Cout]     # taps at column w
        c_r = cmix[2 * Cout:]         # taps at column w+1
        acc = (pltpu.roll(c_l, shift=1, axis=1) * m_l
               + c_c
               + pltpu.roll(c_r, shift=HW - 1, axis=1) * m_r)
        yout_ref[0] = acc * s2_ref[...] + b2_ref[...]

    return kernel


# ---------------------------------------------------------------------------
# Plain-JAX glue: nearest upsample, params, wrapper, reference.
# ---------------------------------------------------------------------------
def nearest_resize_nchw(y, out_h, out_w):
    # PyTorch F.interpolate(mode='nearest'): src = floor(dst * in / out)
    _, _, Hy, Wy = y.shape
    rows = (jnp.arange(out_h) * Hy) // out_h
    cols = (jnp.arange(out_w) * Wy) // out_w
    return y[:, :, rows][:, :, :, cols]


def init_params(key, in_channel, mid_channel, out_channel, length):
    ks = jax.random.split(key, 12)
    eps = 1e-5

    def kaiming_uniform(k, shape, fan_in, a):
        bound = math.sqrt(6.0 / ((1.0 + a * a) * fan_in))
        return jax.random.uniform(k, shape, jnp.float32, -bound, bound)

    def bn_fold(k, c):
        k1, k2, k3, k4 = jax.random.split(k, 4)
        gamma = jax.random.uniform(k1, (c,), jnp.float32, 0.5, 1.5)
        beta = jax.random.uniform(k2, (c,), jnp.float32, -0.1, 0.1)
        mean = jax.random.uniform(k3, (c,), jnp.float32, -0.1, 0.1)
        var = jax.random.uniform(k4, (c,), jnp.float32, 0.5, 1.5)
        scale = gamma / jnp.sqrt(var + eps)
        bias = beta - mean * scale
        return scale, bias

    p = {}
    # conv1: torch weight (mid, in, 1, 1), kaiming_uniform a=1 -> stored (mid, in)
    p["w1"] = kaiming_uniform(ks[0], (mid_channel, in_channel), in_channel, 1.0)
    p["bn1_scale"], p["bn1_bias"] = bn_fold(ks[1], mid_channel)
    # conv2: torch weight (out, mid, 3, 3), kaiming_uniform a=1
    w2 = kaiming_uniform(ks[2], (out_channel, mid_channel, 3, 3),
                         mid_channel * 9, 1.0)
    p["w2_full"] = w2                                        # for the reference
    # packed block matrix: Wpack[kw*Cout+o, kh*Cmid+m] = w2[o, m, kh, kw]
    p["w2_pack"] = jnp.transpose(w2, (3, 0, 2, 1)).reshape(
        3 * out_channel, 3 * mid_channel)
    p["bn2_scale"], p["bn2_bias"] = bn_fold(ks[3], out_channel)
    a5 = math.sqrt(5.0)
    # fc / fc1: torch weight (len, mid, 1, 1), default conv init -> stored (mid, len)
    p["fc_w"] = kaiming_uniform(ks[4], (length, mid_channel), mid_channel, a5).T
    p["fc_bn_scale"], p["fc_bn_bias"] = bn_fold(ks[5], length)
    p["fc1_w"] = kaiming_uniform(ks[6], (length, mid_channel), mid_channel, a5).T
    # fcs[0], fcs[1]: torch weight (mid, len, 1, 1) + bias (mid,)
    bb = math.sqrt(1.0 / length)
    for i, (kw, kb) in enumerate(((ks[7], ks[8]), (ks[9], ks[10]))):
        w = kaiming_uniform(kw, (mid_channel, length), length, a5)   # (mid, len)
        b = jax.random.uniform(kb, (mid_channel,), jnp.float32, -bb, bb)
        p[f"fcs{i}_w"] = w
        p[f"fcs{i}_b"] = b
    # fused attention-head weights for the kernel
    p["fcs_wcat"] = jnp.concatenate([p["fcs0_w"], p["fcs1_w"]], axis=0)
    p["fcs_bcat"] = jnp.concatenate([p["fcs0_b"], p["fcs1_b"]],
                                    axis=0).reshape(2 * mid_channel, 1)
    return p


def sk_forward(params, x_nchw, y_nchw=None, fuse=True):
    x = x_nchw.astype(jnp.float32)                       # NCHW == (B, C, HW) flat
    B, Cin, H, W = x.shape
    Cmid = params["w1"].shape[0]
    Cout = params["bn2_scale"].shape[0]
    L = params["fc_w"].shape[1]
    HW = H * W
    x3 = x.reshape(B, Cin, HW)

    full2 = lambda b: (0, 0)

    if fuse:
        y = nearest_resize_nchw(y_nchw.astype(jnp.float32), H, W)
        y3 = y.reshape(B, Cmid, HW)
        if B == 1:                        # mirrors `x.size(0) == 1` in torch
            fc_w = params["fc1_w"]        # fc1: conv + ReLU (no BN)
            fc_s = jnp.ones((1, L), jnp.float32)
            fc_b = jnp.zeros((1, L), jnp.float32)
        else:
            fc_w = params["fc_w"]
            fc_s = params["fc_bn_scale"].reshape(1, L)
            fc_b = params["fc_bn_bias"].reshape(1, L)
        inputs = (x3, y3,
                  params["w1"],
                  params["bn1_scale"].reshape(Cmid, 1),
                  params["bn1_bias"].reshape(Cmid, 1),
                  fc_w, fc_s, fc_b,
                  params["fcs_wcat"], params["fcs_bcat"],
                  params["w2_pack"],
                  params["bn2_scale"].reshape(Cout, 1),
                  params["bn2_bias"].reshape(Cout, 1))
        in_specs = [
            pl.BlockSpec((1, Cin, HW), lambda b: (b, 0, 0)),
            pl.BlockSpec((1, Cmid, HW), lambda b: (b, 0, 0)),
            pl.BlockSpec((Cmid, Cin), full2),
            pl.BlockSpec((Cmid, 1), full2),
            pl.BlockSpec((Cmid, 1), full2),
            pl.BlockSpec((Cmid, L), full2),
            pl.BlockSpec((1, L), full2),
            pl.BlockSpec((1, L), full2),
            pl.BlockSpec((2 * Cmid, L), full2),
            pl.BlockSpec((2 * Cmid, 1), full2),
            pl.BlockSpec((3 * Cout, 3 * Cmid), full2),
            pl.BlockSpec((Cout, 1), full2),
            pl.BlockSpec((Cout, 1), full2),
        ]
    else:
        inputs = (x3,
                  params["w1"],
                  params["bn1_scale"].reshape(Cmid, 1),
                  params["bn1_bias"].reshape(Cmid, 1),
                  params["w2_pack"],
                  params["bn2_scale"].reshape(Cout, 1),
                  params["bn2_bias"].reshape(Cout, 1))
        in_specs = [
            pl.BlockSpec((1, Cin, HW), lambda b: (b, 0, 0)),
            pl.BlockSpec((Cmid, Cin), full2),
            pl.BlockSpec((Cmid, 1), full2),
            pl.BlockSpec((Cmid, 1), full2),
            pl.BlockSpec((3 * Cout, 3 * Cmid), full2),
            pl.BlockSpec((Cout, 1), full2),
            pl.BlockSpec((Cout, 1), full2),
        ]

    kernel = _make_sk_kernel(H, W, Cin, Cmid, Cout, L, fuse)

    flops = 2 * B * (HW * Cin * Cmid                      # conv1
                     + HW * (3 * Cmid) * (3 * Cout))      # fused conv2 matmul
    if fuse:
        flops += 2 * B * (Cmid * L + L * 2 * Cmid)        # attention fcs
    bytes_accessed = 4 * (sum(int(a.size) for a in inputs)
                          + B * HW * (Cout + Cmid))

    y_flat, x_flat = pl.pallas_call(
        kernel,
        out_shape=(jax.ShapeDtypeStruct((B, Cout, HW), jnp.float32),
                   jax.ShapeDtypeStruct((B, Cmid, HW), jnp.float32)),
        grid=(B,),
        in_specs=in_specs,
        out_specs=(pl.BlockSpec((1, Cout, HW), lambda b: (b, 0, 0)),
                   pl.BlockSpec((1, Cmid, HW), lambda b: (b, 0, 0))),
        compiler_params=pltpu.CompilerParams(
            dimension_semantics=("parallel",),
            vmem_limit_bytes=32 * 1024 * 1024),
        cost_estimate=pl.CostEstimate(
            flops=flops, transcendentals=2 * B * Cmid,
            bytes_accessed=bytes_accessed),
    )(*inputs)

    # NCHW return convention of the PyTorch module: (y, x)
    return (y_flat.reshape(B, Cout, H, W), x_flat.reshape(B, Cmid, H, W))


def sk_reference(params, x_nchw, y_nchw=None, fuse=True):
    """Pure-JAX reference of the same forward pass (for verification)."""
    x = x_nchw.astype(jnp.float32)
    B, Cin, H, W = x.shape
    Cmid = params["w1"].shape[0]
    x1 = jnp.einsum("mc,bchw->bmhw", params["w1"], x)
    x1 = (x1 * params["bn1_scale"][None, :, None, None]
          + params["bn1_bias"][None, :, None, None])
    if fuse:
        y = nearest_resize_nchw(y_nchw.astype(jnp.float32), H, W)
        gap = jnp.mean(x1 + y, axis=(2, 3))                       # (B, Cmid)
        if B == 1:
            z = jnp.maximum(gap @ params["fc1_w"], 0.0)
        else:
            z = gap @ params["fc_w"]
            z = jnp.maximum(z * params["fc_bn_scale"]
                            + params["fc_bn_bias"], 0.0)
        a0 = z @ params["fcs0_w"].T + params["fcs0_b"]
        a1 = z @ params["fcs1_w"].T + params["fcs1_b"]
        att = jax.nn.softmax(jnp.stack([a0, a1], axis=1), axis=1)  # (B,2,Cmid)
        x1 = (x1 * att[:, 0][:, :, None, None]
              + y * att[:, 1][:, :, None, None])
    y2 = jax.lax.conv_general_dilated(
        x1, params["w2_full"], window_strides=(1, 1),
        padding=((1, 1), (1, 1)),
        dimension_numbers=("NCHW", "OIHW", "NCHW"))
    y2 = (y2 * params["bn2_scale"][None, :, None, None]
          + params["bn2_bias"][None, :, None, None])
    return y2, x1


if __name__ == "__main__":
    key = jax.random.PRNGKey(0)
    kx, ky, kp = jax.random.split(key, 3)

    in_c, mid_c, out_c = 4, 32, 32
    length = max(mid_c // 16, 32)          # the module's `len`
    B, H, W = 2, 16, 16

    x = jax.random.normal(kx, (B, in_c, H, W), jnp.float32)     # NCHW like torch
    y = jax.random.normal(ky, (B, mid_c, 8, 8), jnp.float32)    # lower-res branch

    params = init_params(kp, in_c, mid_c, out_c, length)

    fwd = jax.jit(partial(sk_forward, fuse=True))
    y_out, x_out = fwd(params, x, y)
    jax.block_until_ready((y_out, x_out))

    assert y_out.shape == (B, out_c, H, W)
    assert x_out.shape == (B, mid_c, H, W)
    assert bool(jnp.all(jnp.isfinite(y_out)))
    assert bool(jnp.all(jnp.isfinite(x_out)))

    y_exp, x_exp = sk_reference(params, x, y, fuse=True)
    assert jnp.allclose(x_out, x_exp, rtol=5e-2, atol=5e-2), (
        float(jnp.max(jnp.abs(x_out - x_exp))))
    assert jnp.allclose(y_out, y_exp, rtol=5e-2, atol=5e-2), (
        float(jnp.max(jnp.abs(y_out - y_exp))))

    # B == 1 exercises the fc1 (conv+ReLU, no BN) attention branch.
    y1_out, x1_out = jax.jit(partial(sk_forward, fuse=True))(params, x[:1], y[:1])
    jax.block_until_ready((y1_out, x1_out))
    y1_exp, x1_exp = sk_reference(params, x[:1], y[:1], fuse=True)
    assert jnp.allclose(y1_out, y1_exp, rtol=5e-2, atol=5e-2)
    assert jnp.allclose(x1_out, x1_exp, rtol=5e-2, atol=5e-2)

    # fuse=False path (conv1 -> conv2 only).
    ynf_out, xnf_out = jax.jit(partial(sk_forward, fuse=False))(params, x)
    jax.block_until_ready((ynf_out, xnf_out))
    ynf_exp, xnf_exp = sk_reference(params, x, fuse=False)
    assert jnp.allclose(ynf_out, ynf_exp, rtol=5e-2, atol=5e-2)
    assert jnp.allclose(xnf_out, xnf_exp, rtol=5e-2, atol=5e-2)

    print("KERNEL_OK")
</pallas_src>

<mosaic_0001>
module attributes {stable_mosaic.version = 11 : i64} {
  func.func @kernel(%arg0: i32, %arg1: memref<1x4x256xf32, #tpu.memory_space<vmem>>, %arg2: memref<1x32x256xf32, #tpu.memory_space<vmem>>, %arg3: memref<32x4xf32, #tpu.memory_space<vmem>>, %arg4: memref<32x1xf32, #tpu.memory_space<vmem>>, %arg5: memref<32x1xf32, #tpu.memory_space<vmem>>, %arg6: memref<32x32xf32, #tpu.memory_space<vmem>>, %arg7: memref<1x32xf32, #tpu.memory_space<vmem>>, %arg8: memref<1x32xf32, #tpu.memory_space<vmem>>, %arg9: memref<64x32xf32, #tpu.memory_space<vmem>>, %arg10: memref<64x1xf32, #tpu.memory_space<vmem>>, %arg11: memref<96x96xf32, #tpu.memory_space<vmem>>, %arg12: memref<32x1xf32, #tpu.memory_space<vmem>>, %arg13: memref<32x1xf32, #tpu.memory_space<vmem>>, %arg14: memref<1x32x256xf32, #tpu.memory_space<vmem>>, %arg15: memref<1x32x256xf32, #tpu.memory_space<vmem>>) attributes {dimension_semantics = [#tpu.dimension_semantics<parallel>], iteration_bounds = array<i64: 2>, scalar_prefetch = 0 : i64, scratch_operands = 0 : i64, tpu.core_type = #tpu.core_type<tc>, window_params = [{transform_indices = @transform_0, window_bounds = array<i64: 1, 4, 256>}, {transform_indices = @transform_1, window_bounds = array<i64: 1, 32, 256>}, {pipeline_mode = #tpu.pipeline_mode<synchronous>, transform_indices = @transform_2, window_bounds = array<i64: 32, 4>}, {pipeline_mode = #tpu.pipeline_mode<synchronous>, transform_indices = @transform_3, window_bounds = array<i64: 32, 1>}, {pipeline_mode = #tpu.pipeline_mode<synchronous>, transform_indices = @transform_4, window_bounds = array<i64: 32, 1>}, {pipeline_mode = #tpu.pipeline_mode<synchronous>, transform_indices = @transform_5, window_bounds = array<i64: 32, 32>}, {pipeline_mode = #tpu.pipeline_mode<synchronous>, transform_indices = @transform_6, window_bounds = array<i64: 1, 32>}, {pipeline_mode = #tpu.pipeline_mode<synchronous>, transform_indices = @transform_7, window_bounds = array<i64: 1, 32>}, {pipeline_mode = #tpu.pipeline_mode<synchronous>, transform_indices = @transform_8, window_bounds = array<i64: 64, 32>}, {pipeline_mode = #tpu.pipeline_mode<synchronous>, transform_indices = @transform_9, window_bounds = array<i64: 64, 1>}, {pipeline_mode = #tpu.pipeline_mode<synchronous>, transform_indices = @transform_10, window_bounds = array<i64: 96, 96>}, {pipeline_mode = #tpu.pipeline_mode<synchronous>, transform_indices = @transform_11, window_bounds = array<i64: 32, 1>}, {pipeline_mode = #tpu.pipeline_mode<synchronous>, transform_indices = @transform_12, window_bounds = array<i64: 32, 1>}, {transform_indices = @transform_13, window_bounds = array<i64: 1, 32, 256>}, {transform_indices = @transform_14, window_bounds = array<i64: 1, 32, 256>}]} {
    %c0 = arith.constant 0 : index
    %c0_0 = arith.constant 0 : index
    %c0_1 = arith.constant 0 : index
    %0 = vector.load %arg1[%c0, %c0_0, %c0_1] : memref<1x4x256xf32, #tpu.memory_space<vmem>>, vector<1x4x256xf32>
    %1 = vector.shape_cast %0 : vector<1x4x256xf32> to vector<4x256xf32>
    %c0_2 = arith.constant 0 : index
    %c0_3 = arith.constant 0 : index
    %2 = vector.load %arg3[%c0_2, %c0_3] : memref<32x4xf32, #tpu.memory_space<vmem>>, vector<32x4xf32>
    %cst = arith.constant dense<0.000000e+00> : vector<32x256xf32>
    %3 = tpu.matmul %2, %1, %cst {dimension_numbers = #tpu.dot_dimension_numbers<[1], [0], [0], [1], [0, 0, 1, 1], [], []>} : vector<32x4xf32>, vector<4x256xf32>, vector<32x256xf32> -> vector<32x256xf32>
    %c0_4 = arith.constant 0 : index
    %c0_5 = arith.constant 0 : index
    %4 = vector.load %arg4[%c0_4, %c0_5] : memref<32x1xf32, #tpu.memory_space<vmem>>, vector<32x1xf32>
    %5 = vector.broadcast %4 : vector<32x1xf32> to vector<32x256xf32>
    %6 = arith.mulf %3, %5 : vector<32x256xf32>
    %c0_6 = arith.constant 0 : index
    %c0_7 = arith.constant 0 : index
    %7 = vector.load %arg5[%c0_6, %c0_7] : memref<32x1xf32, #tpu.memory_space<vmem>>, vector<32x1xf32>
    %8 = vector.broadcast %7 : vector<32x1xf32> to vector<32x256xf32>
    %9 = arith.addf %6, %8 : vector<32x256xf32>
    %c0_8 = arith.constant 0 : index
    %c0_9 = arith.constant 0 : index
    %c0_10 = arith.constant 0 : index
    %10 = vector.load %arg2[%c0_8, %c0_9, %c0_10] : memref<1x32x256xf32, #tpu.memory_space<vmem>>, vector<1x32x256xf32>
    %11 = vector.shape_cast %10 : vector<1x32x256xf32> to vector<32x256xf32>
    %12 = arith.addf %9, %11 : vector<32x256xf32>
    %cst_11 = arith.constant dense<0.000000e+00> : vector<32xf32>
    %13 = vector.multi_reduction <add>, %12, %cst_11 [1] : vector<32x256xf32> to vector<32xf32>
    %14 = vector.shape_cast %13 : vector<32xf32> to vector<32x1xf32>
    %cst_12 = arith.constant 2.560000e+02 : f32
    %15 = vector.broadcast %cst_12 : f32 to vector<32x1xf32>
    %16 = arith.divf %14, %15 : vector<32x1xf32>
    %c0_13 = arith.constant 0 : index
    %c0_14 = arith.constant 0 : index
    %17 = vector.load %arg6[%c0_13, %c0_14] : memref<32x32xf32, #tpu.memory_space<vmem>>, vector<32x32xf32>
    %18 = vector.broadcast %16 : vector<32x1xf32> to vector<32x32xf32>
    %19 = arith.mulf %17, %18 : vector<32x32xf32>
    %cst_15 = arith.constant dense<0.000000e+00> : vector<32xf32>
    %20 = vector.multi_reduction <add>, %19, %cst_15 [0] : vector<32x32xf32> to vector<32xf32>
    %21 = vector.shape_cast %20 : vector<32xf32> to vector<1x32xf32>
    %c0_16 = arith.constant 0 : index
    %c0_17 = arith.constant 0 : index
    %22 = vector.load %arg7[%c0_16, %c0_17] : memref<1x32xf32, #tpu.memory_space<vmem>>, vector<1x32xf32>
    %23 = arith.mulf %21, %22 : vector<1x32xf32>
    %c0_18 = arith.constant 0 : index
    %c0_19 = arith.constant 0 : index
    %24 = vector.load %arg8[%c0_18, %c0_19] : memref<1x32xf32, #tpu.memory_space<vmem>>, vector<1x32xf32>
    %25 = arith.addf %23, %24 : vector<1x32xf32>
    %cst_20 = arith.constant 0.000000e+00 : f32
    %26 = vector.broadcast %cst_20 : f32 to vector<1x32xf32>
    %27 = arith.maximumf %25, %26 : vector<1x32xf32>
    %c0_21 = arith.constant 0 : index
    %c0_22 = arith.constant 0 : index
    %28 = vector.load %arg9[%c0_21, %c0_22] : memref<64x32xf32, #tpu.memory_space<vmem>>, vector<64x32xf32>
    %29 = vector.broadcast %27 : vector<1x32xf32> to vector<64x32xf32>
    %30 = arith.mulf %28, %29 : vector<64x32xf32>
    %cst_23 = arith.constant dense<0.000000e+00> : vector<64xf32>
    %31 = vector.multi_reduction <add>, %30, %cst_23 [1] : vector<64x32xf32> to vector<64xf32>
    %32 = vector.shape_cast %31 : vector<64xf32> to vector<64x1xf32>
    %c0_24 = arith.constant 0 : index
    %c0_25 = arith.constant 0 : index
    %33 = vector.load %arg10[%c0_24, %c0_25] : memref<64x1xf32, #tpu.memory_space<vmem>>, vector<64x1xf32>
    %34 = arith.addf %32, %33 : vector<64x1xf32>
    %35 = vector.extract_strided_slice %34 {offsets = [0, 0], sizes = [32, 1], strides = [1, 1]} : vector<64x1xf32> to vector<32x1xf32>
    %36 = vector.extract_strided_slice %34 {offsets = [32, 0], sizes = [32, 1], strides = [1, 1]} : vector<64x1xf32> to vector<32x1xf32>
    %37 = arith.maximumf %35, %36 : vector<32x1xf32>
    %38 = arith.subf %35, %37 : vector<32x1xf32>
    %39 = math.exp %38 : vector<32x1xf32>
    %40 = arith.subf %36, %37 : vector<32x1xf32>
    %41 = math.exp %40 : vector<32x1xf32>
    %42 = arith.addf %39, %41 : vector<32x1xf32>
    %43 = tpu.reciprocal %42 {approx = true} : vector<32x1xf32> -> vector<32x1xf32>
    %44 = arith.mulf %39, %43 : vector<32x1xf32>
    %45 = vector.broadcast %44 : vector<32x1xf32> to vector<32x256xf32>
    %46 = arith.mulf %9, %45 : vector<32x256xf32>
    %47 = arith.mulf %41, %43 : vector<32x1xf32>
    %48 = vector.broadcast %47 : vector<32x1xf32> to vector<32x256xf32>
    %49 = arith.mulf %11, %48 : vector<32x256xf32>
    %50 = arith.addf %46, %49 : vector<32x256xf32>
    %c0_26 = arith.constant 0 : index
    %c0_27 = arith.constant 0 : index
    %c0_28 = arith.constant 0 : index
    %51 = vector.load %arg15[%c0_26, %c0_27, %c0_28] : memref<1x32x256xf32, #tpu.memory_space<vmem>>, vector<1x32x256xf32>
    %52 = vector.shape_cast %51 : vector<1x32x256xf32> to vector<32x256xf32>
    %53 = vector.shape_cast %50 : vector<32x256xf32> to vector<1x32x256xf32>
    tpu.vector_store %arg15[%c0_26, %c0_27, %c0_28], %53 {strides = array<i32>} : memref<1x32x256xf32, #tpu.memory_space<vmem>>, vector<1x32x256xf32>,
    %54 = tpu.iota {dimensions = array<i32: 1>} : vector<1x256xi32>
    %c16_i32 = arith.constant 16 : i32
    %c0_i32 = arith.constant 0 : i32
    %55 = arith.cmpi eq, %c16_i32, %c0_i32 : i32
    %c1_i32 = arith.constant 1 : i32
    %56 = arith.select %55, %c1_i32, %c16_i32 : i32
    %57 = vector.broadcast %56 : i32 to vector<1x256xi32>
    %58 = arith.remsi %54, %57 : vector<1x256xi32>
    %c0_i32_29 = arith.constant 0 : i32
    %59 = vector.broadcast %c0_i32_29 : i32 to vector<1x256xi32>
    %60 = arith.cmpi ne, %58, %59 : vector<1x256xi32>
    %c0_i32_30 = arith.constant 0 : i32
    %61 = vector.broadcast %c0_i32_30 : i32 to vector<1x256xi32>
    %62 = arith.cmpi slt, %58, %61 : vector<1x256xi32>
    %c0_i32_31 = arith.constant 0 : i32
    %63 = arith.cmpi slt, %56, %c0_i32_31 : i32
    %64 = vector.broadcast %63 : i1 to vector<1x256xi1>
    %65 = vector.broadcast %64 : vector<1x256xi1> to vector<1x256xi1>
    %66 = arith.xori %62, %65 : vector<1x256xi1>
    %67 = arith.andi %66, %60 : vector<1x256xi1>
    %68 = vector.broadcast %56 : i32 to vector<1x256xi32>
    %69 = arith.addi %58, %68 : vector<1x256xi32>
    %70 = arith.select %67, %69, %58 : vector<1x256xi1>, vector<1x256xi32>
    %c16_i32_32 = arith.constant 16 : i32
    %71 = vector.broadcast %c16_i32_32 : i32 to vector<1x256xi32>
    %72 = arith.cmpi sge, %54, %71 : vector<1x256xi32>
    %73 = arith.extui %72 : vector<1x256xi1> to vector<1x256xi32>
    %74 = arith.sitofp %73 : vector<1x256xi32> to vector<1x256xf32>
    %c240_i32 = arith.constant 240 : i32
    %75 = vector.broadcast %c240_i32 : i32 to vector<1x256xi32>
    %76 = arith.cmpi slt, %54, %75 : vector<1x256xi32>
    %77 = arith.extui %76 : vector<1x256xi1> to vector<1x256xi32>
    %78 = arith.sitofp %77 : vector<1x256xi32> to vector<1x256xf32>
    %c0_i32_33 = arith.constant 0 : i32
    %79 = vector.broadcast %c0_i32_33 : i32 to vector<1x256xi32>
    %80 = arith.cmpi sgt, %70, %79 : vector<1x256xi32>
    %81 = arith.extui %80 : vector<1x256xi1> to vector<1x256xi32>
    %82 = arith.sitofp %81 : vector<1x256xi32> to vector<1x256xf32>
    %c15_i32 = arith.constant 15 : i32
    %83 = vector.broadcast %c15_i32 : i32 to vector<1x256xi32>
    %84 = arith.cmpi slt, %70, %83 : vector<1x256xi32>
    %85 = arith.extui %84 : vector<1x256xi1> to vector<1x256xi32>
    %86 = arith.sitofp %85 : vector<1x256xi32> to vector<1x256xf32>
    %c16_i32_34 = arith.constant 16 : i32
    %87 = tpu.dynamic_rotate %50 by %c16_i32_34 dim 1 : vector<32x256xf32>, i32 -> vector<32x256xf32>
    %88 = vector.broadcast %74 : vector<1x256xf32> to vector<32x256xf32>
    %89 = arith.mulf %87, %88 : vector<32x256xf32>
    %c240_i32_35 = arith.constant 240 : i32
    %90 = tpu.dynamic_rotate %50 by %c240_i32_35 dim 1 : vector<32x256xf32>, i32 -> vector<32x256xf32>
    %91 = vector.broadcast %78 : vector<1x256xf32> to vector<32x256xf32>
    %92 = arith.mulf %90, %91 : vector<32x256xf32>
    %93 = tpu.concatenate %89, %50, %92 in 0 : vector<32x256xf32>, vector<32x256xf32>, vector<32x256xf32> -> vector<96x256xf32>
    %c0_36 = arith.constant 0 : index
    %c0_37 = arith.constant 0 : index
    %94 = vector.load %arg11[%c0_36, %c0_37] : memref<96x96xf32, #tpu.memory_space<vmem>>, vector<96x96xf32>
    %cst_38 = arith.constant dense<0.000000e+00> : vector<96x256xf32>
    %95 = tpu.matmul %94, %93, %cst_38 {dimension_numbers = #tpu.dot_dimension_numbers<[1], [0], [0], [1], [0, 0, 1, 1], [], []>} : vector<96x96xf32>, vector<96x256xf32>, vector<96x256xf32> -> vector<96x256xf32>
    %96 = vector.extract_strided_slice %95 {offsets = [0, 0], sizes = [32, 256], strides = [1, 1]} : vector<96x256xf32> to vector<32x256xf32>
    %97 = vector.extract_strided_slice %95 {offsets = [32, 0], sizes = [32, 256], strides = [1, 1]} : vector<96x256xf32> to vector<32x256xf32>
    %98 = vector.extract_strided_slice %95 {offsets = [64, 0], sizes = [32, 256], strides = [1, 1]} : vector<96x256xf32> to vector<32x256xf32>
    %c1_i32_39 = arith.constant 1 : i32
    %99 = tpu.dynamic_rotate %96 by %c1_i32_39 dim 1 : vector<32x256xf32>, i32 -> vector<32x256xf32>
    %100 = vector.broadcast %82 : vector<1x256xf32> to vector<32x256xf32>
    %101 = arith.mulf %99, %100 : vector<32x256xf32>
    %102 = arith.addf %101, %97 : vector<32x256xf32>
    %c255_i32 = arith.constant 255 : i32
    %103 = tpu.dynamic_rotate %98 by %c255_i32 dim 1 : vector<32x256xf32>, i32 -> vector<32x256xf32>
    %104 = vector.broadcast %86 : vector<1x256xf32> to vector<32x256xf32>
    %105 = arith.mulf %103, %104 : vector<32x256xf32>
    %106 = arith.addf %102, %105 : vector<32x256xf32>
    %c0_40 = arith.constant 0 : index
    %c0_41 = arith.constant 0 : index
    %107 = vector.load %arg12[%c0_40, %c0_41] : memref<32x1xf32, #tpu.memory_space<vmem>>, vector<32x1xf32>
    %108 = vector.broadcast %107 : vector<32x1xf32> to vector<32x256xf32>
    %109 = arith.mulf %106, %108 : vector<32x256xf32>
    %c0_42 = arith.constant 0 : index
    %c0_43 = arith.constant 0 : index
    %110 = vector.load %arg13[%c0_42, %c0_43] : memref<32x1xf32, #tpu.memory_space<vmem>>, vector<32x1xf32>
    %111 = vector.broadcast %110 : vector<32x1xf32> to vector<32x256xf32>
    %112 = arith.addf %109, %111 : vector<32x256xf32>
    %c0_44 = arith.constant 0 : index
    %c0_45 = arith.constant 0 : index
    %c0_46 = arith.constant 0 : index
    %113 = vector.load %arg14[%c0_44, %c0_45, %c0_46] : memref<1x32x256xf32, #tpu.memory_space<vmem>>, vector<1x32x256xf32>
    %114 = vector.shape_cast %113 : vector<1x32x256xf32> to vector<32x256xf32>
    %115 = vector.shape_cast %112 : vector<32x256xf32> to vector<1x32x256xf32>
    tpu.vector_store %arg14[%c0_44, %c0_45, %c0_46], %115 {strides = array<i32>} : memref<1x32x256xf32, #tpu.memory_space<vmem>>, vector<1x32x256xf32>,
    return
  }
  func.func @transform_0(%arg0: i32) -> (i32, i32, i32) {
    %c0_i32 = arith.constant 0 : i32
    %c0_i32_0 = arith.constant 0 : i32
    %c0_i32_1 = arith.constant 0 : i32
    return %arg0, %c0_i32, %c0_i32_0 : i32, i32, i32
  }
  func.func @transform_1(%arg0: i32) -> (i32, i32, i32) {
    %c0_i32 = arith.constant 0 : i32
    %c0_i32_0 = arith.constant 0 : i32
    %c0_i32_1 = arith.constant 0 : i32
    return %arg0, %c0_i32, %c0_i32_0 : i32, i32, i32
  }
  func.func @transform_2(%arg0: i32) -> (i32, i32) {
    %c0_i32 = arith.constant 0 : i32
    %c0_i32_0 = arith.constant 0 : i32
    %c0_i32_1 = arith.constant 0 : i32
    return %c0_i32, %c0_i32_0 : i32, i32
  }
  func.func @transform_3(%arg0: i32) -> (i32, i32) {
    %c0_i32 = arith.constant 0 : i32
    %c0_i32_0 = arith.constant 0 : i32
    %c0_i32_1 = arith.constant 0 : i32
    return %c0_i32, %c0_i32_0 : i32, i32
  }
  func.func @transform_4(%arg0: i32) -> (i32, i32) {
    %c0_i32 = arith.constant 0 : i32
    %c0_i32_0 = arith.constant 0 : i32
    %c0_i32_1 = arith.constant 0 : i32
    return %c0_i32, %c0_i32_0 : i32, i32
  }
  func.func @transform_5(%arg0: i32) -> (i32, i32) {
    %c0_i32 = arith.constant 0 : i32
    %c0_i32_0 = arith.constant 0 : i32
    %c0_i32_1 = arith.constant 0 : i32
    return %c0_i32, %c0_i32_0 : i32, i32
  }
  func.func @transform_6(%arg0: i32) -> (i32, i32) {
    %c0_i32 = arith.constant 0 : i32
    %c0_i32_0 = arith.constant 0 : i32
    %c0_i32_1 = arith.constant 0 : i32
    return %c0_i32, %c0_i32_0 : i32, i32
  }
  func.func @transform_7(%arg0: i32) -> (i32, i32) {
    %c0_i32 = arith.constant 0 : i32
    %c0_i32_0 = arith.constant 0 : i32
    %c0_i32_1 = arith.constant 0 : i32
    return %c0_i32, %c0_i32_0 : i32, i32
  }
  func.func @transform_8(%arg0: i32) -> (i32, i32) {
    %c0_i32 = arith.constant 0 : i32
    %c0_i32_0 = arith.constant 0 : i32
    %c0_i32_1 = arith.constant 0 : i32
    return %c0_i32, %c0_i32_0 : i32, i32
  }
  func.func @transform_9(%arg0: i32) -> (i32, i32) {
    %c0_i32 = arith.constant 0 : i32
    %c0_i32_0 = arith.constant 0 : i32
    %c0_i32_1 = arith.constant 0 : i32
    return %c0_i32, %c0_i32_0 : i32, i32
  }
  func.func @transform_10(%arg0: i32) -> (i32, i32) {
    %c0_i32 = arith.constant 0 : i32
    %c0_i32_0 = arith.constant 0 : i32
    %c0_i32_1 = arith.constant 0 : i32
    return %c0_i32, %c0_i32_0 : i32, i32
  }
  func.func @transform_11(%arg0: i32) -> (i32, i32) {
    %c0_i32 = arith.constant 0 : i32
    %c0_i32_0 = arith.constant 0 : i32
    %c0_i32_1 = arith.constant 0 : i32
    return %c0_i32, %c0_i32_0 : i32, i32
  }
  func.func @transform_12(%arg0: i32) -> (i32, i32) {
    %c0_i32 = arith.constant 0 : i32
    %c0_i32_0 = arith.constant 0 : i32
    %c0_i32_1 = arith.constant 0 : i32
    return %c0_i32, %c0_i32_0 : i32, i32
  }
  func.func @transform_13(%arg0: i32) -> (i32, i32, i32) {
    %c0_i32 = arith.constant 0 : i32
    %c0_i32_0 = arith.constant 0 : i32
    %c0_i32_1 = arith.constant 0 : i32
    return %arg0, %c0_i32, %c0_i32_0 : i32, i32, i32
  }
  func.func @transform_14(%arg0: i32) -> (i32, i32, i32) {
    %c0_i32 = arith.constant 0 : i32
    %c0_i32_0 = arith.constant 0 : i32
    %c0_i32_1 = arith.constant 0 : i32
    return %arg0, %c0_i32, %c0_i32_0 : i32, i32, i32
  }
}

</mosaic_0001>

<llo_original>
// kernel: sk_forward.1
$region0: #{sk_forward.1}
  #allocation0 [shape = 'u32[]', space=smem, size = 0x4, offset = 0x4, fixed_abs, tag = 'smem constant byte address 0x4 - core index']
  #allocation1 [shape = 'u32[144,128]{1,0:T(1,128)}', space=vmem, size = 0x12000, scoped, tag = 'internal scratch']
  %s0 = inlined_call_operand.vmem [shape: f32[2,4,256], index: 0, kind: input, shape index: {}]
  %s1 = inlined_call_operand.vmem [shape: f32[2,32,256], index: 1, kind: input, shape index: {}]
  %s2 = inlined_call_operand.vmem [shape: f32[32,4], index: 2, kind: input, shape index: {}]
  %s3 = inlined_call_operand.vmem [shape: f32[32,1], index: 3, kind: input, shape index: {}]
  %s4 = inlined_call_operand.vmem [shape: f32[32,1], index: 4, kind: input, shape index: {}]
  %s5 = inlined_call_operand.vmem [shape: f32[32,32], index: 5, kind: input, shape index: {}]
  %s6 = inlined_call_operand.vmem [shape: f32[1,32], index: 6, kind: input, shape index: {}]
  %s7 = inlined_call_operand.vmem [shape: f32[1,32], index: 7, kind: input, shape index: {}]
  %s8 = inlined_call_operand.vmem [shape: f32[64,32], index: 8, kind: input, shape index: {}]
  %s9 = inlined_call_operand.vmem [shape: f32[64,1], index: 9, kind: input, shape index: {}]
  %s10 = inlined_call_operand.vmem [shape: f32[96,96], index: 10, kind: input, shape index: {}]
  %s11 = inlined_call_operand.vmem [shape: f32[32,1], index: 11, kind: input, shape index: {}]
  %s12 = inlined_call_operand.vmem [shape: f32[32,1], index: 12, kind: input, shape index: {}]
  %s13 = inlined_call_operand.vmem [shape: f32[2,32,256], index: 13, kind: output, shape index: {0}]
  %s14 = inlined_call_operand.vmem [shape: f32[2,32,256], index: 14, kind: output, shape index: {1}]
  %15 = xla_tuple %s13, %s14
  %s16 = sld [smem:[#allocation0]]
  $region93: #{sk_forward.1} parent=0
    _
  %s18 = ssub.s32 1, %s16
  %s19 = scalar_select 0, %s18, %s16
  loop: start=0, step=1, limit=4
  $region2: #{sk_forward.1} parent=0 // loop_pre_header
    _
  $region3: #{sk_forward.1} parent=0 // loop_header
    %s21 = sphi 0, %s25
    %p22 = scmp.ge.s32.totalorder %s21, 4
    %s31 = sphi 0, %s33
    %s34 = sphi 0, %s31
    %s35 = sphi 0, %s34
    %s51 = sphi 0, %s35
    %s57 = sphi 0, %s59
    %s60 = sphi 0, %s57
    %s61 = sphi 0, %s60
    %s77 = sphi 0, %s61
    %s81 = sphi 0, %s81
    %s83 = sphi 0, %s81
    %s84 = sphi 0, %s83
    %s98 = sphi 0, %s84
    %s102 = sphi 0, %s102
    %s104 = sphi 0, %s102
    %s105 = sphi 0, %s104
    %s119 = sphi 0, %s105
    %s123 = sphi 0, %s123
    %s125 = sphi 0, %s123
    %s126 = sphi 0, %s125
    %s140 = sphi 0, %s126
    %s144 = sphi 0, %s144
    %s146 = sphi 0, %s144
    %s147 = sphi 0, %s146
    %s161 = sphi 0, %s147
    %s165 = sphi 0, %s165
    %s167 = sphi 0, %s165
    %s168 = sphi 0, %s167
    %s182 = sphi 0, %s168
    %s186 = sphi 0, %s186
    %s188 = sphi 0, %s186
    %s189 = sphi 0, %s188
    %s203 = sphi 0, %s189
    %s207 = sphi 0, %s207
    %s209 = sphi 0, %s207
    %s210 = sphi 0, %s209
    %s224 = sphi 0, %s210
    %s228 = sphi 0, %s228
    %s230 = sphi 0, %s228
    %s231 = sphi 0, %s230
    %s245 = sphi 0, %s231
    %s249 = sphi 0, %s249
    %s251 = sphi 0, %s249
    %s252 = sphi 0, %s251
    %s266 = sphi 0, %s252
    %s270 = sphi 0, %s270
    %s272 = sphi 0, %s270
    %s273 = sphi 0, %s272
    %s287 = sphi 0, %s273
    %s291 = sphi 0, %s291
    %s293 = sphi 0, %s291
    %s294 = sphi 0, %s293
    %s308 = sphi 0, %s294
    %s314 = sphi 0, %s316
    %s317 = sphi 0, %s314
    %s318 = sphi 0, %s317
    %s334 = sphi 0, %s318
    %s340 = sphi 0, %s342
    %s343 = sphi 0, %s340
    %s344 = sphi 0, %s343
    %s360 = sphi 0, %s344
  $region4: #{sk_forward.1} parent=0 // loop_header_branch
    %24 = sbr.rel (%p22) target = $region8
  $region5: #{sk_forward.1} parent=0 // loop_body
    %s26 = ssub.s32 %s21, 1
    %s27 = ssub.s32 %s21, 2
    %s28 = sadd.s32 %s21, 1
    %s29 = ssub.s32 %s21, %s28
    %p30 = scmp.eq.s32.totalorder %s29, 0
    %s32 = sadd.s32 %s31, 1
    %s33 = scalar_select %p30, %s31, %s32
    %p36 = pneg %p30
    %p37 = scmp.eq.s32.totalorder %s21, 1
    %p38 = por %p36, %p37
    %p39 = scmp.ne.s32.totalorder %s31, %s34
    %p40 = scmp.eq.s32.totalorder %s21, 0
    %p41 = por %p39, %p40
    %p42 = scmp.ne.s32.totalorder %s31, %s34
    %p43 = scmp.eq.s32.totalorder %s26, 1
    %p44 = por %p42, %p43
    %p45 = scmp.ne.s32.totalorder %s34, %s35
    %p46 = scmp.eq.s32.totalorder %s26, 0
    %p47 = por %p45, %p46
    %p48 = scmp.ne.s32.totalorder %s34, %s35
    %p49 = scmp.eq.s32.totalorder %s27, 1
    %p50 = por %p48, %p49
    %p52 = scmp.ne.s32.totalorder %s35, %s51
    %p53 = scmp.eq.s32.totalorder %s27, 0
    %p54 = por %p52, %p53
    %s55 = ssub.s32 %s21, %s28
    %p56 = scmp.eq.s32.totalorder %s55, 0
    %s58 = sadd.s32 %s57, 1
    %s59 = scalar_select %p56, %s57, %s58
    %p62 = pneg %p56
    %p63 = scmp.eq.s32.totalorder %s21, 1
    %p64 = por %p62, %p63
    %p65 = scmp.ne.s32.totalorder %s57, %s60
    %p66 = scmp.eq.s32.totalorder %s21, 0
    %p67 = por %p65, %p66
    %p68 = scmp.ne.s32.totalorder %s57, %s60
    %p69 = scmp.eq.s32.totalorder %s26, 1
    %p70 = por %p68, %p69
    %p71 = scmp.ne.s32.totalorder %s60, %s61
    %p72 = scmp.eq.s32.totalorder %s26, 0
    %p73 = por %p71, %p72
    %p74 = scmp.ne.s32.totalorder %s60, %s61
    %p75 = scmp.eq.s32.totalorder %s27, 1
    %p76 = por %p74, %p75
    %p78 = scmp.ne.s32.totalorder %s61, %s77
    %p79 = scmp.eq.s32.totalorder %s27, 0
    %p80 = por %p78, %p79
    %s82 = sadd.s32 %s81, 1
    %p85 = scmp.eq.s32.totalorder %s21, 1
    %p86 = scmp.ne.s32.totalorder %s81, %s83
    %p87 = scmp.eq.s32.totalorder %s21, 0
    %p88 = por %p86, %p87
    %p89 = scmp.ne.s32.totalorder %s81, %s83
    %p90 = scmp.eq.s32.totalorder %s26, 1
    %p91 = por %p89, %p90
    %p92 = scmp.ne.s32.totalorder %s83, %s84
    %p93 = scmp.eq.s32.totalorder %s26, 0
    %p94 = por %p92, %p93
    %p95 = scmp.ne.s32.totalorder %s83, %s84
    %p96 = scmp.eq.s32.totalorder %s27, 1
    %p97 = por %p95, %p96
    %p99 = scmp.ne.s32.totalorder %s84, %s98
    %p100 = scmp.eq.s32.totalorder %s27, 0
    %p101 = por %p99, %p100
    %s103 = sadd.s32 %s102, 1
    %p106 = scmp.eq.s32.totalorder %s21, 1
    %p107 = scmp.ne.s32.totalorder %s102, %s104
    %p108 = scmp.eq.s32.totalorder %s21, 0
    %p109 = por %p107, %p108
    %p110 = scmp.ne.s32.totalorder %s102, %s104
    %p111 = scmp.eq.s32.totalorder %s26, 1
    %p112 = por %p110, %p111
    %p113 = scmp.ne.s32.totalorder %s104, %s105
    %p114 = scmp.eq.s32.totalorder %s26, 0
    %p115 = por %p113, %p114
    %p116 = scmp.ne.s32.totalorder %s104, %s105
    %p117 = scmp.eq.s32.totalorder %s27, 1
    %p118 = por %p116, %p117
    %p120 = scmp.ne.s32.totalorder %s105, %s119
    %p121 = scmp.eq.s32.totalorder %s27, 0
    %p122 = por %p120, %p121
    %s124 = sadd.s32 %s123, 1
    %p127 = scmp.eq.s32.totalorder %s21, 1
    %p128 = scmp.ne.s32.totalorder %s123, %s125
    %p129 = scmp.eq.s32.totalorder %s21, 0
    %p130 = por %p128, %p129
    %p131 = scmp.ne.s32.totalorder %s123, %s125
    %p132 = scmp.eq.s32.totalorder %s26, 1
    %p133 = por %p131, %p132
    %p134 = scmp.ne.s32.totalorder %s125, %s126
    %p135 = scmp.eq.s32.totalorder %s26, 0
    %p136 = por %p134, %p135
    %p137 = scmp.ne.s32.totalorder %s125, %s126
    %p138 = scmp.eq.s32.totalorder %s27, 1
    %p139 = por %p137, %p138
    %p141 = scmp.ne.s32.totalorder %s126, %s140
    %p142 = scmp.eq.s32.totalorder %s27, 0
    %p143 = por %p141, %p142
    %s145 = sadd.s32 %s144, 1
    %p148 = scmp.eq.s32.totalorder %s21, 1
    %p149 = scmp.ne.s32.totalorder %s144, %s146
    %p150 = scmp.eq.s32.totalorder %s21, 0
    %p151 = por %p149, %p150
    %p152 = scmp.ne.s32.totalorder %s144, %s146
    %p153 = scmp.eq.s32.totalorder %s26, 1
    %p154 = por %p152, %p153
    %p155 = scmp.ne.s32.totalorder %s146, %s147
    %p156 = scmp.eq.s32.totalorder %s26, 0
    %p157 = por %p155, %p156
    %p158 = scmp.ne.s32.totalorder %s146, %s147
    %p159 = scmp.eq.s32.totalorder %s27, 1
    %p160 = por %p158, %p159
    %p162 = scmp.ne.s32.totalorder %s147, %s161
    %p163 = scmp.eq.s32.totalorder %s27, 0
    %p164 = por %p162, %p163
    %s166 = sadd.s32 %s165, 1
    %p169 = scmp.eq.s32.totalorder %s21, 1
    %p170 = scmp.ne.s32.totalorder %s165, %s167
    %p171 = scmp.eq.s32.totalorder %s21, 0
    %p172 = por %p170, %p171
    %p173 = scmp.ne.s32.totalorder %s165, %s167
    %p174 = scmp.eq.s32.totalorder %s26, 1
    %p175 = por %p173, %p174
    %p176 = scmp.ne.s32.totalorder %s167, %s168
    %p177 = scmp.eq.s32.totalorder %s26, 0
    %p178 = por %p176, %p177
    %p179 = scmp.ne.s32.totalorder %s167, %s168
    %p180 = scmp.eq.s32.totalorder %s27, 1
    %p181 = por %p179, %p180
    %p183 = scmp.ne.s32.totalorder %s168, %s182
    %p184 = scmp.eq.s32.totalorder %s27, 0
    %p185 = por %p183, %p184
    %s187 = sadd.s32 %s186, 1
    %p190 = scmp.eq.s32.totalorder %s21, 1
    %p191 = scmp.ne.s32.totalorder %s186, %s188
    %p192 = scmp.eq.s32.totalorder %s21, 0
    %p193 = por %p191, %p192
    %p194 = scmp.ne.s32.totalorder %s186, %s188
    %p195 = scmp.eq.s32.totalorder %s26, 1
    %p196 = por %p194, %p195
    %p197 = scmp.ne.s32.totalorder %s188, %s189
    %p198 = scmp.eq.s32.totalorder %s26, 0
    %p199 = por %p197, %p198
    %p200 = scmp.ne.s32.totalorder %s188, %s189
    %p201 = scmp.eq.s32.totalorder %s27, 1
    %p202 = por %p200, %p201
    %p204 = scmp.ne.s32.totalorder %s189, %s203
    %p205 = scmp.eq.s32.totalorder %s27, 0
    %p206 = por %p204, %p205
    %s208 = sadd.s32 %s207, 1
    %p211 = scmp.eq.s32.totalorder %s21, 1
    %p212 = scmp.ne.s32.totalorder %s207, %s209
    %p213 = scmp.eq.s32.totalorder %s21, 0
    %p214 = por %p212, %p213
    %p215 = scmp.ne.s32.totalorder %s207, %s209
    %p216 = scmp.eq.s32.totalorder %s26, 1
    %p217 = por %p215, %p216
    %p218 = scmp.ne.s32.totalorder %s209, %s210
    %p219 = scmp.eq.s32.totalorder %s26, 0
    %p220 = por %p218, %p219
    %p221 = scmp.ne.s32.totalorder %s209, %s210
    %p222 = scmp.eq.s32.totalorder %s27, 1
    %p223 = por %p221, %p222
    %p225 = scmp.ne.s32.totalorder %s210, %s224
    %p226 = scmp.eq.s32.totalorder %s27, 0
    %p227 = por %p225, %p226
    %s229 = sadd.s32 %s228, 1
    %p232 = scmp.eq.s32.totalorder %s21, 1
    %p233 = scmp.ne.s32.totalorder %s228, %s230
    %p234 = scmp.eq.s32.totalorder %s21, 0
    %p235 = por %p233, %p234
    %p236 = scmp.ne.s32.totalorder %s228, %s230
    %p237 = scmp.eq.s32.totalorder %s26, 1
    %p238 = por %p236, %p237
    %p239 = scmp.ne.s32.totalorder %s230, %s231
    %p240 = scmp.eq.s32.totalorder %s26, 0
    %p241 = por %p239, %p240
    %p242 = scmp.ne.s32.totalorder %s230, %s231
    %p243 = scmp.eq.s32.totalorder %s27, 1
    %p244 = por %p242, %p243
    %p246 = scmp.ne.s32.totalorder %s231, %s245
    %p247 = scmp.eq.s32.totalorder %s27, 0
    %p248 = por %p246, %p247
    %s250 = sadd.s32 %s249, 1
    %p253 = scmp.eq.s32.totalorder %s21, 1
    %p254 = scmp.ne.s32.totalorder %s249, %s251
    %p255 = scmp.eq.s32.totalorder %s21, 0
    %p256 = por %p254, %p255
    %p257 = scmp.ne.s32.totalorder %s249, %s251
    %p258 = scmp.eq.s32.totalorder %s26, 1
    %p259 = por %p257, %p258
    %p260 = scmp.ne.s32.totalorder %s251, %s252
    %p261 = scmp.eq.s32.totalorder %s26, 0
    %p262 = por %p260, %p261
    %p263 = scmp.ne.s32.totalorder %s251, %s252
    %p264 = scmp.eq.s32.totalorder %s27, 1
    %p265 = por %p263, %p264
    %p267 = scmp.ne.s32.totalorder %s252, %s266
    %p268 = scmp.eq.s32.totalorder %s27, 0
    %p269 = por %p267, %p268
    %s271 = sadd.s32 %s270, 1
    %p274 = scmp.eq.s32.totalorder %s21, 1
    %p275 = scmp.ne.s32.totalorder %s270, %s272
    %p276 = scmp.eq.s32.totalorder %s21, 0
    %p277 = por %p275, %p276
    %p278 = scmp.ne.s32.totalorder %s270, %s272
    %p279 = scmp.eq.s32.totalorder %s26, 1
    %p280 = por %p278, %p279
    %p281 = scmp.ne.s32.totalorder %s272, %s273
    %p282 = scmp.eq.s32.totalorder %s26, 0
    %p283 = por %p281, %p282
    %p284 = scmp.ne.s32.totalorder %s272, %s273
    %p285 = scmp.eq.s32.totalorder %s27, 1
    %p286 = por %p284, %p285
    %p288 = scmp.ne.s32.totalorder %s273, %s287
    %p289 = scmp.eq.s32.totalorder %s27, 0
    %p290 = por %p288, %p289
    %s292 = sadd.s32 %s291, 1
    %p295 = scmp.eq.s32.totalorder %s21, 1
    %p296 = scmp.ne.s32.totalorder %s291, %s293
    %p297 = scmp.eq.s32.totalorder %s21, 0
    %p298 = por %p296, %p297
    %p299 = scmp.ne.s32.totalorder %s291, %s293
    %p300 = scmp.eq.s32.totalorder %s26, 1
    %p301 = por %p299, %p300
    %p302 = scmp.ne.s32.totalorder %s293, %s294
    %p303 = scmp.eq.s32.totalorder %s26, 0
    %p304 = por %p302, %p303
    %p305 = scmp.ne.s32.totalorder %s293, %s294
    %p306 = scmp.eq.s32.totalorder %s27, 1
    %p307 = por %p305, %p306
    %p309 = scmp.ne.s32.totalorder %s294, %s308
    %p310 = scmp.eq.s32.totalorder %s27, 0
    %p311 = por %p309, %p310
    %s312 = ssub.s32 %s21, %s28
    %p313 = scmp.eq.s32.totalorder %s312, 0
    %s315 = sadd.s32 %s314, 1
    %s316 = scalar_select %p313, %s314, %s315
    %p319 = pneg %p313
    %p320 = scmp.eq.s32.totalorder %s21, 1
    %p321 = por %p319, %p320
    %p322 = scmp.ne.s32.totalorder %s314, %s317
    %p323 = scmp.eq.s32.totalorder %s21, 0
    %p324 = por %p322, %p323
    %p325 = scmp.ne.s32.totalorder %s314, %s317
    %p326 = scmp.eq.s32.totalorder %s26, 1
    %p327 = por %p325, %p326
    %p328 = scmp.ne.s32.totalorder %s317, %s318
    %p329 = scmp.eq.s32.totalorder %s26, 0
    %p330 = por %p328, %p329
    %p331 = scmp.ne.s32.totalorder %s317, %s318
    %p332 = scmp.eq.s32.totalorder %s27, 1
    %p333 = por %p331, %p332
    %p335 = scmp.ne.s32.totalorder %s318, %s334
    %p336 = scmp.eq.s32.totalorder %s27, 0
    %p337 = por %p335, %p336
    %s338 = ssub.s32 %s21, %s28
    %p339 = scmp.eq.s32.totalorder %s338, 0
    %s341 = sadd.s32 %s340, 1
    %s342 = scalar_select %p339, %s340, %s341
    %p345 = pneg %p339
    %p346 = scmp.eq.s32.totalorder %s21, 1
    %p347 = por %p345, %p346
    %p348 = scmp.ne.s32.totalorder %s340, %s343
    %p349 = scmp.eq.s32.totalorder %s21, 0
    %p350 = por %p348, %p349
    %p351 = scmp.ne.s32.totalorder %s340, %s343
    %p352 = scmp.eq.s32.totalorder %s26, 1
    %p353 = por %p351, %p352
    %p354 = scmp.ne.s32.totalorder %s343, %s344
    %p355 = scmp.eq.s32.totalorder %s26, 0
    %p356 = por %p354, %p355
    %p357 = scmp.ne.s32.totalorder %s343, %s344
    %p358 = scmp.eq.s32.totalorder %s27, 1
    %p359 = por %p357, %p358
    %p361 = scmp.ne.s32.totalorder %s344, %s360
    %p362 = scmp.eq.s32.totalorder %s27, 0
    %p363 = por %p361, %p362
    %p364 = scmp.le.s32.totalorder 1, %s21
    %p365 = scmp.lt.s32.totalorder %s21, 3
    %p366 = pnand %p364, %p365
    %p367 = pneg %p366
    // Predicated region
    $region9: #{sk_forward.1} parent=5 // pred_check
      _
    $region10: #{sk_forward.1} parent=5 // pred_check_branch
      %369 = sbr.rel (%p366) target = $region12
    $region11: #{sk_forward.1} parent=5 // pred_region
      %s370 = ssub.s32 %s21, 1
      // Predicated region
      $region13: #{sk_forward.1} parent=11 // pred_check
        %p371 = pneg %p94
      $region14: #{sk_forward.1} parent=11 // pred_check_branch
        %373 = sbr.rel (%p371) target = $region16
      $region15: #{sk_forward.1} parent=11 // pred_region
        _
      $region16: #{sk_forward.1} parent=11 // pred_fallthru
        _
      // Predicated region
      $region17: #{sk_forward.1} parent=11 // pred_check
        %p374 = pneg %p115
      $region18: #{sk_forward.1} parent=11 // pred_check_branch
        %376 = sbr.rel (%p374) target = $region20
      $region19: #{sk_forward.1} parent=11 // pred_region
        _
      $region20: #{sk_forward.1} parent=11 // pred_fallthru
        _
      // Predicated region
      $region21: #{sk_forward.1} parent=11 // pred_check
        %p377 = pneg %p136
      $region22: #{sk_forward.1} parent=11 // pred_check_branch
        %379 = sbr.rel (%p377) target = $region24
      $region23: #{sk_forward.1} parent=11 // pred_region
        _
      $region24: #{sk_forward.1} parent=11 // pred_fallthru
        _
      // Predicated region
      $region25: #{sk_forward.1} parent=11 // pred_check
        %p380 = pneg %p157
      $region26: #{sk_forward.1} parent=11 // pred_check_branch
        %382 = sbr.rel (%p380) target = $region28
      $region27: #{sk_forward.1} parent=11 // pred_region
        _
      $region28: #{sk_forward.1} parent=11 // pred_fallthru
        _
      // Predicated region
      $region29: #{sk_forward.1} parent=11 // pred_check
        %p383 = pneg %p178
      $region30: #{sk_forward.1} parent=11 // pred_check_branch
        %385 = sbr.rel (%p383) target = $region32
      $region31: #{sk_forward.1} parent=11 // pred_region
        _
      $region32: #{sk_forward.1} parent=11 // pred_fallthru
        _
      // Predicated region
      $region33: #{sk_forward.1} parent=11 // pred_check
        %p386 = pneg %p199
      $region34: #{sk_forward.1} parent=11 // pred_check_branch
        %388 = sbr.rel (%p386) target = $region36
      $region35: #{sk_forward.1} parent=11 // pred_region
        _
      $region36: #{sk_forward.1} parent=11 // pred_fallthru
        _
      // Predicated region
      $region37: #{sk_forward.1} parent=11 // pred_check
        %p389 = pneg %p220
      $region38: #{sk_forward.1} parent=11 // pred_check_branch
        %391 = sbr.rel (%p389) target = $region40
      $region39: #{sk_forward.1} parent=11 // pred_region
        _
      $region40: #{sk_forward.1} parent=11 // pred_fallthru
        _
      // Predicated region
      $region41: #{sk_forward.1} parent=11 // pred_check
        %p392 = pneg %p241
      $region42: #{sk_forward.1} parent=11 // pred_check_branch
        %394 = sbr.rel (%p392) target = $region44
      $region43: #{sk_forward.1} parent=11 // pred_region
        _
      $region44: #{sk_forward.1} parent=11 // pred_fallthru
        _
      // Predicated region
      $region45: #{sk_forward.1} parent=11 // pred_check
        %p395 = pneg %p262
      $region46: #{sk_forward.1} parent=11 // pred_check_branch
        %397 = sbr.rel (%p395) target = $region48
      $region47: #{sk_forward.1} parent=11 // pred_region
        _
      $region48: #{sk_forward.1} parent=11 // pred_fallthru
        _
      // Predicated region
      $region49: #{sk_forward.1} parent=11 // pred_check
        %p398 = pneg %p283
      $region50: #{sk_forward.1} parent=11 // pred_check_branch
        %400 = sbr.rel (%p398) target = $region52
      $region51: #{sk_forward.1} parent=11 // pred_region
        _
      $region52: #{sk_forward.1} parent=11 // pred_fallthru
        _
      // Predicated region
      $region53: #{sk_forward.1} parent=11 // pred_check
        %p401 = pneg %p304
      $region54: #{sk_forward.1} parent=11 // pred_check_branch
        %403 = sbr.rel (%p401) target = $region56
      $region55: #{sk_forward.1} parent=11 // pred_region
        _
      $region56: #{sk_forward.1} parent=11 // pred_fallthru
        _
    $region12: #{sk_forward.1} parent=5 // pred_fallthru
      _
    %p404 = scmp.lt.s32.totalorder %s21, 2
    // Predicated region
    $region57: #{sk_forward.1} parent=5 // pred_check
      %p405 = pneg %p404
    $region58: #{sk_forward.1} parent=5 // pred_check_branch
      %407 = sbr.rel (%p405) target = $region60
    $region59: #{sk_forward.1} parent=5 // pred_region
      // Predicated region
      $region61: #{sk_forward.1} parent=59 // pred_check
        %p408 = pneg %p41
      $region62: #{sk_forward.1} parent=59 // pred_check_branch
        %410 = sbr.rel (%p408) target = $region64
      $region63: #{sk_forward.1} parent=59 // pred_region
        %p411 = scmp.lt.s32.totalorder %s21, 1
        %s412 = scalar_select %p411, %s21, 1
        %s413 = smul.addr %s412, 2
        %s414 = smul.addr %s413, 4
        %s415 = scalar_lea.vmem %s0, %s414
      $region64: #{sk_forward.1} parent=59 // pred_fallthru
        _
      // Predicated region
      $region65: #{sk_forward.1} parent=59 // pred_check
        %p416 = pneg %p67
      $region66: #{sk_forward.1} parent=59 // pred_check_branch
        %418 = sbr.rel (%p416) target = $region68
      $region67: #{sk_forward.1} parent=59 // pred_region
        %p419 = scmp.lt.s32.totalorder %s21, 1
        %s420 = scalar_select %p419, %s21, 1
        %s421 = smul.addr %s420, 8
        %s422 = smul.addr %s421, 8
        %s423 = scalar_lea.vmem %s1, %s422
      $region68: #{sk_forward.1} parent=59 // pred_fallthru
        _
    $region60: #{sk_forward.1} parent=5 // pred_fallthru
      _
    %p424 = scmp.le.s32.totalorder 1, %s21
    %p425 = scmp.lt.s32.totalorder %s21, 3
    %p426 = pnand %p424, %p425
    %p427 = pneg %p426
    // Predicated region
    $region69: #{sk_forward.1} parent=5 // pred_check
      _
    $region70: #{sk_forward.1} parent=5 // pred_check_branch
      %429 = sbr.rel (%p426) target = $region72
    $region71: #{sk_forward.1} parent=5 // pred_region
      %s430 = ssub.s32 %s21, 1
      %p431 = scmp.lt.s32.totalorder %s26, 1
      %s432 = scalar_select %p431, %s26, 1
      %s433 = smul.addr %s432, 2
      %s434 = smul.addr %s433, 4
      %s435 = scalar_lea.vmem %s0, %s434
      %p436 = pneg %p47
      %p437 = pneg %p44
      %p438 = scmp.lt.s32.totalorder %s26, 1
      %s439 = scalar_select %p438, %s26, 1
      %s440 = smul.addr %s439, 8
      %s441 = smul.addr %s440, 8
      %s442 = scalar_lea.vmem %s1, %s441
      %p443 = pneg %p73
      %p444 = pneg %p70
      %p445 = pneg %p94
      %p446 = pneg %p91
      %p447 = pneg %p115
      %p448 = pneg %p112
      %p449 = pneg %p136
      %p450 = pneg %p133
      %p451 = pneg %p157
      %p452 = pneg %p154
      %p453 = pneg %p178
      %p454 = pneg %p175
      %p455 = pneg %p199
      %p456 = pneg %p196
      %p457 = pneg %p220
      %p458 = pneg %p217
      %p459 = pneg %p241
      %p460 = pneg %p238
      %p461 = pneg %p262
      %p462 = pneg %p259
      %p463 = pneg %p283
      %p464 = pneg %p280
      %p465 = pneg %p304
      %p466 = pneg %p301
      %p467 = pneg %p330
      %p468 = pneg %p327
      %p469 = scmp.lt.s32.totalorder %s26, 1
      %s470 = scalar_select %p469, %s26, 1
      %s471 = smul.addr %s470, 8
      %s472 = smul.addr %s471, 8
      %s473 = scalar_lea.vmem %s13, %s472
      %p474 = pneg %p356
      %p475 = pneg %p353
      %p476 = scmp.lt.s32.totalorder %s26, 1
      %s477 = scalar_select %p476, %s26, 1
      %s478 = smul.addr %s477, 8
      %s479 = smul.addr %s478, 8
      %s480 = scalar_lea.vmem %s14, %s479
      %p481 = scmp.lt.s32.totalorder %s26, 1
      %s482 = scalar_select %p481, %s26, 1
      %s483 = smul.addr %s482, 2
      %s484 = smul.addr %s483, 4
      %s485 = scalar_lea.vmem %s0, %s484
      %p486 = scmp.lt.s32.totalorder %s26, 1
      %s487 = scalar_select %p486, %s26, 1
      %s488 = smul.addr %s487, 8
      %s489 = smul.addr %s488, 8
      %s490 = scalar_lea.vmem %s1, %s489
      %p491 = scmp.lt.s32.totalorder %s26, 1
      %s492 = scalar_select %p491, %s26, 1
      %s493 = smul.addr %s492, 8
      %s494 = smul.addr %s493, 8
      %s495 = scalar_lea.vmem %s13, %s494
      %p496 = scmp.lt.s32.totalorder %s26, 1
      %s497 = scalar_select %p496, %s26, 1
      %s498 = smul.addr %s497, 8
      %s499 = smul.addr %s498, 8
      %s500 = scalar_lea.vmem %s14, %s499
      %v501 = vld [vmem:[%s485] sm:$0xff]
      %v502 = vld [vmem:[%s2] sm:$0xff]
      %v503 = vld [vmem:[%s2 + $0x8] sm:$0xff]
      %v504 = vld [vmem:[%s2 + $0x10] sm:$0xff]
      %v505 = vld [vmem:[%s2 + $0x18] sm:$0xff]
      %v507 = vcombine.high %v501, %v501
      %vm508 = vcmask 31744
      %v510 = vsel %vm508, %v502, 0
      %v513 = vsel %vm508, %v503, 0
      %v516 = vsel %vm508, %v504, 0
      %v519 = vsel %vm508, %v505, 0
      %vm521 = vcmask 1043456
      %v522 = vsel %vm521, %v501, 0
      %v524 = vsel %vm521, %v507, 0
      %526 = vmatprep.subr.mxu0 0.0
      %527 = vmatpush1.msra.mxu0 0.0
      %528 = vmatprep.subr.mxu0 0.0
      %529 = vmatpush1.msra.mxu0 0.0
      %530 = vmatprep.subr.mxu0 0.0
      %531 = vmatpush1.msra.mxu0 0.0
      %532 = vmatprep.subr.mxu0 0.0
      %533 = vmatpush1.msra.mxu0 0.0
      %534 = vmatprep.subr.mxu0 0.0
      %535 = vmatpush1.msra.mxu0 0.0
      %536 = vmatprep.subr.mxu0 0.0
      %537 = vmatpush1.msra.mxu0 0.0
      %538 = vmatprep.subr.mxu0 0.0
      %539 = vmatpush1.msra.mxu0 0.0
      %540 = vmatprep.subr.mxu0 0.0
      %541 = vmatpush1.msra.mxu0 0.0
      %542 = vmatprep.subr.mxu0 0.0
      %543 = vmatpush1.msra.mxu0 0.0
      %544 = vmatprep.subr.mxu0 0.0
      %545 = vmatpush1.msra.mxu0 0.0
      %546 = vmatprep.subr.mxu0 0.0
      %547 = vmatpush1.msra.mxu0 0.0
      %548 = vmatprep.subr.mxu0 0.0
      %549 = vmatpush1.msra.mxu0 0.0
      %550 = vmatprep.subr.mxu0 0.0
      %551 = vmatpush1.msra.mxu0 0.0
      %552 = vmatprep.subr.mxu0 0.0
      %553 = vmatpush1.msra.mxu0 0.0
      %554 = vmatprep.subr.mxu0 0.0
      %555 = vmatpush1.msra.mxu0 0.0
      %556 = vmatprep.subr.mxu0 %v524
      %557 = vmatpush1.msra.mxu0 %v522
      %558 = vmatprep.subr.mxu0 0.0
      %559 = vmatpush2.msra.mxu0 0.0
      %560 = vmatprep.subr.mxu0 0.0
      %561 = vmatpush2.msra.mxu0 0.0
      %562 = vmatprep.subr.mxu0 0.0
      %563 = vmatpush2.msra.mxu0 0.0
      %564 = vmatprep.subr.mxu0 0.0
      %565 = vmatpush2.msra.mxu0 0.0
      %566 = vmatprep.subr.mxu0 0.0
      %567 = vmatpush2.msra.mxu0 0.0
      %568 = vmatprep.subr.mxu0 0.0
      %569 = vmatpush2.msra.mxu0 0.0
      %570 = vmatprep.subr.mxu0 0.0
      %571 = vmatpush2.msra.mxu0 0.0
      %572 = vmatprep.subr.mxu0 0.0
      %573 = vmatpush2.msra.mxu0 0.0
      %574 = vmatprep.subr.mxu0 0.0
      %575 = vmatpush2.msra.mxu0 0.0
      %576 = vmatprep.subr.mxu0 0.0
      %577 = vmatpush2.msra.mxu0 0.0
      %578 = vmatprep.subr.mxu0 0.0
      %579 = vmatpush2.msra.mxu0 0.0
      %580 = vmatprep.subr.mxu0 0.0
      %581 = vmatpush2.msra.mxu0 0.0
      %582 = vmatprep.subr.mxu0 0.0
      %583 = vmatpush2.msra.mxu0 0.0
      %584 = vmatprep.subr.mxu0 0.0
      %585 = vmatpush2.msra.mxu0 0.0
      %586 = vmatprep.subr.mxu0 0.0
      %587 = vmatpush2.msra.mxu0 0.0
      %588 = vmatprep.subr.mxu0 0.0
      %589 = vmatpush2.msra.mxu0 0.0
      %590 = vmatprep.mubr.f32.mxu0 0.0
      %591 = vmatmul.mubr.f32.gmra.mxu0 %v510
      %v592 = vpop.f32.mrf.mxu0
      %v593 = vadd.f32 0.0, %v592
      %v594 = vpop.f32.mrf.mxu0
      %v595 = vadd.f32 0.0, %v594
      %596 = vmatprep.mubr.f32.mxu0 0.0
      %597 = vmatmul.mubr.f32.gmra.mxu0 %v513
      %v598 = vpop.f32.mrf.mxu0
      %v599 = vadd.f32 0.0, %v598
      %v600 = vpop.f32.mrf.mxu0
      %v601 = vadd.f32 0.0, %v600
      %602 = vmatprep.mubr.f32.mxu0 0.0
      %603 = vmatmul.mubr.f32.gmra.mxu0 %v516
      %v604 = vpop.f32.mrf.mxu0
      %v605 = vadd.f32 0.0, %v604
      %v606 = vpop.f32.mrf.mxu0
      %v607 = vadd.f32 0.0, %v606
      %608 = vmatprep.mubr.f32.mxu0 0.0
      %609 = vmatmul.mubr.f32.gmra.mxu0 %v519
      %v610 = vpop.f32.mrf.mxu0
      %v611 = vadd.f32 0.0, %v610
      %v612 = vpop.f32.mrf.mxu0
      %v613 = vadd.f32 0.0, %v612
      %614 = vdwg.mxu0
      %v615 = vld [vmem:[%s3] sm:$0xff]
      %v616 = vld [vmem:[%s3 + $0x8] sm:$0xff]
      %v617 = vld [vmem:[%s3 + $0x10] sm:$0xff]
      %v618 = vld [vmem:[%s3 + $0x18] sm:$0xff]
      %620 = vset.pattern.permute.xlu0 0
      %621 = vperm.xlu0 %620, %v615
      %v622 = vpop.permute.xlu0 %621
      %625 = vset.pattern.permute.xlu0 0
      %626 = vperm.xlu0 %625, %v616
      %v627 = vpop.permute.xlu0 %626
      %630 = vset.pattern.permute.xlu0 0
      %631 = vperm.xlu0 %630, %v617
      %v632 = vpop.permute.xlu0 %631
      %635 = vset.pattern.permute.xlu0 0
      %636 = vperm.xlu0 %635, %v618
      %v637 = vpop.permute.xlu0 %636
      %v639 = vmul.f32 %v593, %v622
      %v640 = vmul.f32 %v595, %v622
      %v641 = vmul.f32 %v599, %v627
      %v642 = vmul.f32 %v601, %v627
      %v643 = vmul.f32 %v605, %v632
      %v644 = vmul.f32 %v607, %v632
      %v645 = vmul.f32 %v611, %v637
      %v646 = vmul.f32 %v613, %v637
      %v647 = vld [vmem:[%s4] sm:$0xff]
      %v648 = vld [vmem:[%s4 + $0x8] sm:$0xff]
      %v649 = vld [vmem:[%s4 + $0x10] sm:$0xff]
      %v650 = vld [vmem:[%s4 + $0x18] sm:$0xff]
      %652 = vset.pattern.permute.xlu0 0
      %653 = vperm.xlu0 %652, %v647
      %v654 = vpop.permute.xlu0 %653
      %657 = vset.pattern.permute.xlu0 0
      %658 = vperm.xlu0 %657, %v648
      %v659 = vpop.permute.xlu0 %658
      %662 = vset.pattern.permute.xlu0 0
      %663 = vperm.xlu0 %662, %v649
      %v664 = vpop.permute.xlu0 %663
      %667 = vset.pattern.permute.xlu0 0
      %668 = vperm.xlu0 %667, %v650
      %v669 = vpop.permute.xlu0 %668
      %v671 = vadd.f32 %v639, %v654
      %v672 = vadd.f32 %v640, %v654
      %v673 = vadd.f32 %v641, %v659
      %v674 = vadd.f32 %v642, %v659
      %v675 = vadd.f32 %v643, %v664
      %v676 = vadd.f32 %v644, %v664
      %v677 = vadd.f32 %v645, %v669
      %v678 = vadd.f32 %v646, %v669
      %v679 = vld [vmem:[%s490] sm:$0xff]
      %v680 = vld [vmem:[%s490 + $0x8] sm:$0xff]
      %v681 = vld [vmem:[%s490 + $0x10] sm:$0xff]
      %v682 = vld [vmem:[%s490 + $0x18] sm:$0xff]
      %v683 = vld [vmem:[%s490 + $0x20] sm:$0xff]
      %v684 = vld [vmem:[%s490 + $0x28] sm:$0xff]
      %v685 = vld [vmem:[%s490 + $0x30] sm:$0xff]
      %v686 = vld [vmem:[%s490 + $0x38] sm:$0xff]
      %v687 = vadd.f32 %v671, %v679
      %v688 = vadd.f32 %v672, %v680
      %v689 = vadd.f32 %v673, %v681
      %v690 = vadd.f32 %v674, %v682
      %v691 = vadd.f32 %v675, %v683
      %v692 = vadd.f32 %v676, %v684
      %v693 = vadd.f32 %v677, %v685
      %v694 = vadd.f32 %v678, %v686
      %v695 = vadd.f32 %v687, %v688
      %696 = vadd.xlane.f32.xlu0 %v695
      %v697 = vpop.xlane.xlu0 %696
      %v698 = vadd.f32 %v689, %v690
      %699 = vadd.xlane.f32.xlu0 %v698
      %v700 = vpop.xlane.xlu0 %699
      %v701 = vadd.f32 %v691, %v692
      %702 = vadd.xlane.f32.xlu0 %v701
      %v703 = vpop.xlane.xlu0 %702
      %v704 = vadd.f32 %v693, %v694
      %705 = vadd.xlane.f32.xlu0 %v704
      %v706 = vpop.xlane.xlu0 %705
      %v707 = vrcp.pop 256.0
      %v708 = vmul.f32 %v697, %v707
      %v709 = vmul.f32 %v700, %v707
      %v710 = vmul.f32 %v703, %v707
      %v711 = vmul.f32 %v706, %v707
      %v712 = vld [vmem:[%s5] sm:$0xff]
      %v713 = vld [vmem:[%s5 + $0x8] sm:$0xff]
      %v714 = vld [vmem:[%s5 + $0x10] sm:$0xff]
      %v715 = vld [vmem:[%s5 + $0x18] sm:$0xff]
      %v716 = vmul.f32 %v712, %v708
      %v717 = vmul.f32 %v713, %v709
      %v718 = vmul.f32 %v714, %v710
      %v719 = vmul.f32 %v715, %v711
      %vm720 = vcmask 261120
      %v721 = vsel %vm720, %v716, 0.0
      %v722 = vsel %vm720, %v717, 0.0
      %v723 = vadd.f32 %v721, %v722
      %v724 = vsel %vm720, %v718, 0.0
      %v725 = vadd.f32 %v723, %v724
      %v726 = vsel %vm720, %v719, 0.0
      %v727 = vadd.f32 %v725, %v726
      %v728 = vrot.slane %v727, 4
      %v729 = vadd.f32 %v727, %v728
      %v730 = vrot.slane %v729, 2
      %v731 = vadd.f32 %v729, %v730
      %v732 = vrot.slane %v731, 1
      %v733 = vadd.f32 %v731, %v732
      %v734 = vld [vmem:[%s6] sm:$0x1]
      %v735 = vmul.f32 %v733, %v734
      %v736 = vld [vmem:[%s7] sm:$0x1]
      %v737 = vadd.f32 %v735, %v736
      %v738 = vmax.f32 %v737, 0.0
      %v739 = vld [vmem:[%s8] sm:$0xff]
      %v740 = vld [vmem:[%s8 + $0x8] sm:$0xff]
      %v741 = vld [vmem:[%s8 + $0x10] sm:$0xff]
      %v742 = vld [vmem:[%s8 + $0x18] sm:$0xff]
      %v743 = vld [vmem:[%s8 + $0x20] sm:$0xff]
      %v744 = vld [vmem:[%s8 + $0x28] sm:$0xff]
      %v745 = vld [vmem:[%s8 + $0x30] sm:$0xff]
      %v746 = vld [vmem:[%s8 + $0x38] sm:$0xff]
      %v747 = vlaneseq
      %v748 = vshrl.u32 %v747, 7
      %v749 = vsub.s32 0, %v748
      %v750 = vrot.slane %v738, %v749
      %v751 = vmul.f32 %v739, %v750
      %v752 = vmul.f32 %v740, %v750
      %v753 = vmul.f32 %v741, %v750
      %v754 = vmul.f32 %v742, %v750
      %v755 = vmul.f32 %v743, %v750
      %v756 = vmul.f32 %v744, %v750
      %v757 = vmul.f32 %v745, %v750
      %v758 = vmul.f32 %v746, %v750
      %v759 = vsel %vm720, %v751, 0.0
      %760 = vadd.xlane.f32.xlu0 %v759
      %v761 = vpop.xlane.xlu0 %760
      %v762 = vsel %vm720, %v752, 0.0
      %763 = vadd.xlane.f32.xlu0 %v762
      %v764 = vpop.xlane.xlu0 %763
      %v765 = vsel %vm720, %v753, 0.0
      %766 = vadd.xlane.f32.xlu0 %v765
      %v767 = vpop.xlane.xlu0 %766
      %v768 = vsel %vm720, %v754, 0.0
      %769 = vadd.xlane.f32.xlu0 %v768
      %v770 = vpop.xlane.xlu0 %769
      %v771 = vsel %vm720, %v755, 0.0
      %772 = vadd.xlane.f32.xlu0 %v771
      %v773 = vpop.xlane.xlu0 %772
      %v774 = vsel %vm720, %v756, 0.0
      %775 = vadd.xlane.f32.xlu0 %v774
      %v776 = vpop.xlane.xlu0 %775
      %v777 = vsel %vm720, %v757, 0.0
      %778 = vadd.xlane.f32.xlu0 %v777
      %v779 = vpop.xlane.xlu0 %778
      %v780 = vsel %vm720, %v758, 0.0
      %781 = vadd.xlane.f32.xlu0 %v780
      %v782 = vpop.xlane.xlu0 %781
      %v783 = vld [vmem:[%s9] sm:$0xff]
      %v784 = vld [vmem:[%s9 + $0x8] sm:$0xff]
      %v785 = vld [vmem:[%s9 + $0x10] sm:$0xff]
      %v786 = vld [vmem:[%s9 + $0x18] sm:$0xff]
      %v787 = vld [vmem:[%s9 + $0x20] sm:$0xff]
      %v788 = vld [vmem:[%s9 + $0x28] sm:$0xff]
      %v789 = vld [vmem:[%s9 + $0x30] sm:$0xff]
      %v790 = vld [vmem:[%s9 + $0x38] sm:$0xff]
      %v791 = vadd.f32 %v761, %v783
      %v792 = vadd.f32 %v764, %v784
      %v793 = vadd.f32 %v767, %v785
      %v794 = vadd.f32 %v770, %v786
      %v795 = vadd.f32 %v773, %v787
      %v796 = vadd.f32 %v776, %v788
      %v797 = vadd.f32 %v779, %v789
      %v798 = vadd.f32 %v782, %v790
      %v799 = vmax.f32 %v791, %v795
      %v800 = vmax.f32 %v792, %v796
      %v801 = vmax.f32 %v793, %v797
      %v802 = vmax.f32 %v794, %v798
      %v803 = vsub.f32 %v791, %v799
      %v804 = vsub.f32 %v792, %v800
      %v805 = vsub.f32 %v793, %v801
      %v806 = vsub.f32 %v794, %v802
      %v807 = vmul.f32 %v803, 1.442695
      %v808 = vpow.pop %v807
      %v809 = vmul.f32 %v804, 1.442695
      %v810 = vpow.pop %v809
      %v811 = vmul.f32 %v805, 1.442695
      %v812 = vpow.pop %v811
      %v813 = vmul.f32 %v806, 1.442695
      %v814 = vpow.pop %v813
      %v815 = vsub.f32 %v795, %v799
      %v816 = vsub.f32 %v796, %v800
      %v817 = vsub.f32 %v797, %v801
      %v818 = vsub.f32 %v798, %v802
      %v819 = vmul.f32 %v815, 1.442695
      %v820 = vpow.pop %v819
      %v821 = vmul.f32 %v816, 1.442695
      %v822 = vpow.pop %v821
      %v823 = vmul.f32 %v817, 1.442695
      %v824 = vpow.pop %v823
      %v825 = vmul.f32 %v818, 1.442695
      %v826 = vpow.pop %v825
      %v827 = vadd.f32 %v808, %v820
      %v828 = vadd.f32 %v810, %v822
      %v829 = vadd.f32 %v812, %v824
      %v830 = vadd.f32 %v814, %v826
      %v831 = vrcp.pop %v827
      %v832 = vrcp.pop %v828
      %v833 = vrcp.pop %v829
      %v834 = vrcp.pop %v830
      %v835 = vmul.f32 %v808, %v831
      %v836 = vmul.f32 %v810, %v832
      %v837 = vmul.f32 %v812, %v833
      %v838 = vmul.f32 %v814, %v834
      %840 = vset.pattern.permute.xlu0 0
      %841 = vperm.xlu0 %840, %v835
      %v842 = vpop.permute.xlu0 %841
      %845 = vset.pattern.permute.xlu0 0
      %846 = vperm.xlu0 %845, %v836
      %v847 = vpop.permute.xlu0 %846
      %850 = vset.pattern.permute.xlu0 0
      %851 = vperm.xlu0 %850, %v837
      %v852 = vpop.permute.xlu0 %851
      %855 = vset.pattern.permute.xlu0 0
      %856 = vperm.xlu0 %855, %v838
      %v857 = vpop.permute.xlu0 %856
      %v859 = vmul.f32 %v671, %v842
      %v860 = vmul.f32 %v672, %v842
      %v861 = vmul.f32 %v673, %v847
      %v862 = vmul.f32 %v674, %v847
      %v863 = vmul.f32 %v675, %v852
      %v864 = vmul.f32 %v676, %v852
      %v865 = vmul.f32 %v677, %v857
      %v866 = vmul.f32 %v678, %v857
      %v867 = vmul.f32 %v820, %v831
      %v868 = vmul.f32 %v822, %v832
      %v869 = vmul.f32 %v824, %v833
      %v870 = vmul.f32 %v826, %v834
      %872 = vset.pattern.permute.xlu0 0
      %873 = vperm.xlu0 %872, %v867
      %v874 = vpop.permute.xlu0 %873
      %877 = vset.pattern.permute.xlu0 0
      %878 = vperm.xlu0 %877, %v868
      %v879 = vpop.permute.xlu0 %878
      %882 = vset.pattern.permute.xlu0 0
      %883 = vperm.xlu0 %882, %v869
      %v884 = vpop.permute.xlu0 %883
      %887 = vset.pattern.permute.xlu0 0
      %888 = vperm.xlu0 %887, %v870
      %v889 = vpop.permute.xlu0 %888
      %v891 = vmul.f32 %v679, %v874
      %v892 = vmul.f32 %v680, %v874
      %v893 = vmul.f32 %v681, %v879
      %v894 = vmul.f32 %v682, %v879
      %v895 = vmul.f32 %v683, %v884
      %v896 = vmul.f32 %v684, %v884
      %v897 = vmul.f32 %v685, %v889
      %v898 = vmul.f32 %v686, %v889
      %v899 = vadd.f32 %v859, %v891
      %v900 = vadd.f32 %v860, %v892
      %v901 = vadd.f32 %v861, %v893
      %v902 = vadd.f32 %v862, %v894
      %v903 = vadd.f32 %v863, %v895
      %v904 = vadd.f32 %v864, %v896
      %v905 = vadd.f32 %v865, %v897
      %v906 = vadd.f32 %v866, %v898
      %907 = vst [vmem:[%s500] sm:$0xff] %v899
      %908 = vst [vmem:[%s500 + $0x8] sm:$0xff] %v900
      %909 = vst [vmem:[%s500 + $0x10] sm:$0xff] %v901
      %910 = vst [vmem:[%s500 + $0x18] sm:$0xff] %v902
      %911 = vst [vmem:[%s500 + $0x20] sm:$0xff] %v903
      %912 = vst [vmem:[%s500 + $0x28] sm:$0xff] %v904
      %913 = vst [vmem:[%s500 + $0x30] sm:$0xff] %v905
      %914 = vst [vmem:[%s500 + $0x38] sm:$0xff] %v906
      %v915 = vlaneseq
      %v916 = vand.u32 %v915, 127
      %v917 = vadd.s32 %v916, 128
      %vm918 = vcmp.lt.s32.totalorder %v916, 0
      %v919 = vsub.s32 0, %v916
      %v920 = vsel %vm918, %v919, %v916
      %v921 = vshrl.u32 %v920, 4
      %v922 = vand.u32 %v920, 15
      %v923 = vsub.s32 0, %v922
      %v924 = vsel %vm918, %v923, %v922
      %vm925 = vcmp.lt.s32.totalorder %v917, 0
      %v926 = vsub.s32 0, %v917
      %v927 = vsel %vm925, %v926, %v917
      %v928 = vshrl.u32 %v927, 4
      %v929 = vand.u32 %v927, 15
      %v930 = vsub.s32 0, %v929
      %v931 = vsel %vm925, %v930, %v929
      %vm932 = vcmp.ne.s32.totalorder %v924, 0
      %vm933 = vcmp.ne.s32.totalorder %v931, 0
      %vm934 = vcmp.lt.s32.totalorder %v924, 0
      %vm935 = vcmp.lt.s32.totalorder %v931, 0
      %vm936 = vmand %vm934, %vm932
      %vm937 = vmand %vm935, %vm933
      %v938 = vadd.s32 %v924, 16
      %v939 = vadd.s32 %v931, 16
      %v940 = vsel %vm936, %v938, %v924
      %v941 = vsel %vm937, %v939, %v931
      %vm942 = vcmp.ge.s32.totalorder %v916, 16
      %vm943 = vcmp.ge.s32.totalorder %v917, 16
      %v944 = vsel %vm942, 1, 0
      %v945 = vsel %vm943, 1, 0
      %v946 = vcvt.s32.f32 %v944
      %v947 = vcvt.s32.f32 %v945
      %vm948 = vcmp.lt.s32.totalorder %v916, 240
      %vm949 = vcmp.lt.s32.totalorder %v917, 240
      %v950 = vsel %vm948, 1, 0
      %v951 = vsel %vm949, 1, 0
      %v952 = vcvt.s32.f32 %v950
      %v953 = vcvt.s32.f32 %v951
      %vm954 = vcmp.gt.s32.totalorder %v940, 0
      %vm955 = vcmp.gt.s32.totalorder %v941, 0
      %v956 = vsel %vm954, 1, 0
      %v957 = vsel %vm955, 1, 0
      %v958 = vcvt.s32.f32 %v956
      %v959 = vcvt.s32.f32 %v957
      %vm960 = vcmp.lt.s32.totalorder %v940, 15
      %vm961 = vcmp.lt.s32.totalorder %v941, 15
      %v962 = vsel %vm960, 1, 0
      %v963 = vsel %vm961, 1, 0
      %v964 = vcvt.s32.f32 %v962
      %v965 = vcvt.s32.f32 %v963
      %966 = vrot.lane.b32.xlu0 %v899, 16
      %v967 = vpop.permute.xlu0 %966
      %968 = vrot.lane.b32.xlu0 %v901, 16
      %v969 = vpop.permute.xlu0 %968
      %970 = vrot.lane.b32.xlu0 %v903, 16
      %v971 = vpop.permute.xlu0 %970
      %972 = vrot.lane.b32.xlu0 %v905, 16
      %v973 = vpop.permute.xlu0 %972
      %974 = vrot.lane.b32.xlu0 %v900, 16
      %v975 = vpop.permute.xlu0 %974
      %976 = vrot.lane.b32.xlu0 %v902, 16
      %v977 = vpop.permute.xlu0 %976
      %978 = vrot.lane.b32.xlu0 %v904, 16
      %v979 = vpop.permute.xlu0 %978
      %980 = vrot.lane.b32.xlu0 %v906, 16
      %v981 = vpop.permute.xlu0 %980
      %vm982 = vcmp.lt.s32.totalorder %v916, 16
      %v983 = vsel %vm982, %v967, %v975
      %v984 = vsel %vm982, %v969, %v977
      %v985 = vsel %vm982, %v971, %v979
      %v986 = vsel %vm982, %v973, %v981
      %v987 = vsel %vm982, %v975, %v967
      %v988 = vsel %vm982, %v977, %v969
      %v989 = vsel %vm982, %v979, %v971
      %v990 = vsel %vm982, %v981, %v973
      %v991 = vmul.f32 %v987, %v946
      %v992 = vmul.f32 %v983, %v947
      %v993 = vmul.f32 %v988, %v946
      %v994 = vmul.f32 %v984, %v947
      %v995 = vmul.f32 %v989, %v946
      %v996 = vmul.f32 %v985, %v947
      %v997 = vmul.f32 %v990, %v946
      %v998 = vmul.f32 %v986, %v947
      %999 = vrot.lane.b32.xlu0 %v899, 112
      %v1000 = vpop.permute.xlu0 %999
      %1001 = vrot.lane.b32.xlu0 %v901, 112
      %v1002 = vpop.permute.xlu0 %1001
      %1003 = vrot.lane.b32.xlu0 %v903, 112
      %v1004 = vpop.permute.xlu0 %1003
      %1005 = vrot.lane.b32.xlu0 %v905, 112
      %v1006 = vpop.permute.xlu0 %1005
      %1007 = vrot.lane.b32.xlu0 %v900, 112
      %v1008 = vpop.permute.xlu0 %1007
      %1009 = vrot.lane.b32.xlu0 %v902, 112
      %v1010 = vpop.permute.xlu0 %1009
      %1011 = vrot.lane.b32.xlu0 %v904, 112
      %v1012 = vpop.permute.xlu0 %1011
      %1013 = vrot.lane.b32.xlu0 %v906, 112
      %v1014 = vpop.permute.xlu0 %1013
      %vm1015 = vcmp.lt.s32.totalorder %v916, 112
      %v1016 = vsel %vm1015, %v1000, %v1008
      %v1017 = vsel %vm1015, %v1002, %v1010
      %v1018 = vsel %vm1015, %v1004, %v1012
      %v1019 = vsel %vm1015, %v1006, %v1014
      %v1020 = vsel %vm1015, %v1008, %v1000
      %v1021 = vsel %vm1015, %v1010, %v1002
      %v1022 = vsel %vm1015, %v1012, %v1004
      %v1023 = vsel %vm1015, %v1014, %v1006
      %v1024 = vmul.f32 %v1016, %v952
      %v1025 = vmul.f32 %v1020, %v953
      %v1026 = vmul.f32 %v1017, %v952
      %v1027 = vmul.f32 %v1021, %v953
      %v1028 = vmul.f32 %v1018, %v952
      %v1029 = vmul.f32 %v1022, %v953
      %v1030 = vmul.f32 %v1019, %v952
      %v1031 = vmul.f32 %v1023, %v953
      %v1032 = vld [vmem:[%s10] sm:$0xff]
      %v1033 = vld [vmem:[%s10 + $0x8] sm:$0xff]
      %v1034 = vld [vmem:[%s10 + $0x10] sm:$0xff]
      %v1035 = vld [vmem:[%s10 + $0x18] sm:$0xff]
      %v1036 = vld [vmem:[%s10 + $0x20] sm:$0xff]
      %v1037 = vld [vmem:[%s10 + $0x28] sm:$0xff]
      %v1038 = vld [vmem:[%s10 + $0x30] sm:$0xff]
      %v1039 = vld [vmem:[%s10 + $0x38] sm:$0xff]
      %v1040 = vld [vmem:[%s10 + $0x40] sm:$0xff]
      %v1041 = vld [vmem:[%s10 + $0x48] sm:$0xff]
      %v1042 = vld [vmem:[%s10 + $0x50] sm:$0xff]
      %v1043 = vld [vmem:[%s10 + $0x58] sm:$0xff]
      %vm1044 = vcmask 785408
      %v1046 = vsel %vm1044, %v1032, 0
      %v1049 = vsel %vm1044, %v1033, 0
      %v1052 = vsel %vm1044, %v1034, 0
      %v1055 = vsel %vm1044, %v1035, 0
      %v1058 = vsel %vm1044, %v1036, 0
      %v1061 = vsel %vm1044, %v1037, 0
      %v1064 = vsel %vm1044, %v1038, 0
      %v1067 = vsel %vm1044, %v1039, 0
      %v1070 = vsel %vm1044, %v1040, 0
      %v1073 = vsel %vm1044, %v1041, 0
      %v1076 = vsel %vm1044, %v1042, 0
      %v1079 = vsel %vm1044, %v1043, 0
      %1081 = vmatprep.subr.mxu0 0.0
      %1082 = vmatpush1.msra.mxu0 0.0
      %1083 = vmatprep.subr.mxu0 0.0
      %1084 = vmatpush1.msra.mxu0 0.0
      %1085 = vmatprep.subr.mxu0 0.0
      %1086 = vmatpush1.msra.mxu0 0.0
      %1087 = vmatprep.subr.mxu0 0.0
      %1088 = vmatpush1.msra.mxu0 0.0
      %1089 = vmatprep.subr.mxu0 %v1031
      %1090 = vmatpush1.msra.mxu0 %v1030
      %1091 = vmatprep.subr.mxu0 %v1029
      %1092 = vmatpush1.msra.mxu0 %v1028
      %1093 = vmatprep.subr.mxu0 %v1027
      %1094 = vmatpush1.msra.mxu0 %v1026
      %1095 = vmatprep.subr.mxu0 %v1025
      %1096 = vmatpush1.msra.mxu0 %v1024
      %1097 = vmatprep.subr.mxu0 %v906
      %1098 = vmatpush1.msra.mxu0 %v905
      %1099 = vmatprep.subr.mxu0 %v904
      %1100 = vmatpush1.msra.mxu0 %v903
      %1101 = vmatprep.subr.mxu0 %v902
      %1102 = vmatpush1.msra.mxu0 %v901
      %1103 = vmatprep.subr.mxu0 %v900
      %1104 = vmatpush1.msra.mxu0 %v899
      %1105 = vmatprep.subr.mxu0 %v998
      %1106 = vmatpush1.msra.mxu0 %v997
      %1107 = vmatprep.subr.mxu0 %v996
      %1108 = vmatpush1.msra.mxu0 %v995
      %1109 = vmatprep.subr.mxu0 %v994
      %1110 = vmatpush1.msra.mxu0 %v993
      %1111 = vmatprep.subr.mxu0 %v992
      %1112 = vmatpush1.msra.mxu0 %v991
      %1113 = vmatprep.subr.mxu0 0.0
      %1114 = vmatpush2.msra.mxu0 0.0
      %1115 = vmatprep.subr.mxu0 0.0
      %1116 = vmatpush2.msra.mxu0 0.0
      %1117 = vmatprep.subr.mxu0 0.0
      %1118 = vmatpush2.msra.mxu0 0.0
      %1119 = vmatprep.subr.mxu0 0.0
      %1120 = vmatpush2.msra.mxu0 0.0
      %1121 = vmatprep.subr.mxu0 0.0
      %1122 = vmatpush2.msra.mxu0 0.0
      %1123 = vmatprep.subr.mxu0 0.0
      %1124 = vmatpush2.msra.mxu0 0.0
      %1125 = vmatprep.subr.mxu0 0.0
      %1126 = vmatpush2.msra.mxu0 0.0
      %1127 = vmatprep.subr.mxu0 0.0
      %1128 = vmatpush2.msra.mxu0 0.0
      %1129 = vmatprep.subr.mxu0 0.0
      %1130 = vmatpush2.msra.mxu0 0.0
      %1131 = vmatprep.subr.mxu0 0.0
      %1132 = vmatpush2.msra.mxu0 0.0
      %1133 = vmatprep.subr.mxu0 0.0
      %1134 = vmatpush2.msra.mxu0 0.0
      %1135 = vmatprep.subr.mxu0 0.0
      %1136 = vmatpush2.msra.mxu0 0.0
      %1137 = vmatprep.subr.mxu0 0.0
      %1138 = vmatpush2.msra.mxu0 0.0
      %1139 = vmatprep.subr.mxu0 0.0
      %1140 = vmatpush2.msra.mxu0 0.0
      %1141 = vmatprep.subr.mxu0 0.0
      %1142 = vmatpush2.msra.mxu0 0.0
      %1143 = vmatprep.subr.mxu0 0.0
      %1144 = vmatpush2.msra.mxu0 0.0
      %1145 = vmatprep.mubr.f32.mxu0 0.0
      %1146 = vmatmul.mubr.f32.gmra.mxu0 %v1046
      %v1147 = vpop.f32.mrf.mxu0
      %v1148 = vadd.f32 0.0, %v1147
      %v1149 = vpop.f32.mrf.mxu0
      %v1150 = vadd.f32 0.0, %v1149
      %1151 = vmatprep.mubr.f32.mxu0 0.0
      %1152 = vmatmul.mubr.f32.gmra.mxu0 %v1049
      %v1153 = vpop.f32.mrf.mxu0
      %v1154 = vadd.f32 0.0, %v1153
      %v1155 = vpop.f32.mrf.mxu0
      %v1156 = vadd.f32 0.0, %v1155
      %1157 = vmatprep.mubr.f32.mxu0 0.0
      %1158 = vmatmul.mubr.f32.gmra.mxu0 %v1052
      %v1159 = vpop.f32.mrf.mxu0
      %v1160 = vadd.f32 0.0, %v1159
      %v1161 = vpop.f32.mrf.mxu0
      %v1162 = vadd.f32 0.0, %v1161
      %1163 = vmatprep.mubr.f32.mxu0 0.0
      %1164 = vmatmul.mubr.f32.gmra.mxu0 %v1055
      %v1165 = vpop.f32.mrf.mxu0
      %v1166 = vadd.f32 0.0, %v1165
      %v1167 = vpop.f32.mrf.mxu0
      %v1168 = vadd.f32 0.0, %v1167
      %1169 = vmatprep.mubr.f32.mxu0 0.0
      %1170 = vmatmul.mubr.f32.gmra.mxu0 %v1058
      %v1171 = vpop.f32.mrf.mxu0
      %v1172 = vadd.f32 0.0, %v1171
      %v1173 = vpop.f32.mrf.mxu0
      %v1174 = vadd.f32 0.0, %v1173
      %1175 = vmatprep.mubr.f32.mxu0 0.0
      %1176 = vmatmul.mubr.f32.gmra.mxu0 %v1061
      %v1177 = vpop.f32.mrf.mxu0
      %v1178 = vadd.f32 0.0, %v1177
      %v1179 = vpop.f32.mrf.mxu0
      %v1180 = vadd.f32 0.0, %v1179
      %1181 = vmatprep.mubr.f32.mxu0 0.0
      %1182 = vmatmul.mubr.f32.gmra.mxu0 %v1064
      %v1183 = vpop.f32.mrf.mxu0
      %v1184 = vadd.f32 0.0, %v1183
      %v1185 = vpop.f32.mrf.mxu0
      %v1186 = vadd.f32 0.0, %v1185
      %1187 = vmatprep.mubr.f32.mxu0 0.0
      %1188 = vmatmul.mubr.f32.gmra.mxu0 %v1067
      %v1189 = vpop.f32.mrf.mxu0
      %v1190 = vadd.f32 0.0, %v1189
      %v1191 = vpop.f32.mrf.mxu0
      %v1192 = vadd.f32 0.0, %v1191
      %1193 = vmatprep.mubr.f32.mxu0 0.0
      %1194 = vmatmul.mubr.f32.gmra.mxu0 %v1070
      %v1195 = vpop.f32.mrf.mxu0
      %v1196 = vadd.f32 0.0, %v1195
      %v1197 = vpop.f32.mrf.mxu0
      %v1198 = vadd.f32 0.0, %v1197
      %1199 = vmatprep.mubr.f32.mxu0 0.0
      %1200 = vmatmul.mubr.f32.gmra.mxu0 %v1073
      %v1201 = vpop.f32.mrf.mxu0
      %v1202 = vadd.f32 0.0, %v1201
      %v1203 = vpop.f32.mrf.mxu0
      %v1204 = vadd.f32 0.0, %v1203
      %1205 = vmatprep.mubr.f32.mxu0 0.0
      %1206 = vmatmul.mubr.f32.gmra.mxu0 %v1076
      %v1207 = vpop.f32.mrf.mxu0
      %v1208 = vadd.f32 0.0, %v1207
      %v1209 = vpop.f32.mrf.mxu0
      %v1210 = vadd.f32 0.0, %v1209
      %1211 = vmatprep.mubr.f32.mxu0 0.0
      %1212 = vmatmul.mubr.f32.gmra.mxu0 %v1079
      %v1213 = vpop.f32.mrf.mxu0
      %v1214 = vadd.f32 0.0, %v1213
      %v1215 = vpop.f32.mrf.mxu0
      %v1216 = vadd.f32 0.0, %v1215
      %1217 = vdwg.mxu0
      %1218 = vrot.lane.b32.xlu0 %v1148, 1
      %v1219 = vpop.permute.xlu0 %1218
      %1220 = vrot.lane.b32.xlu0 %v1154, 1
      %v1221 = vpop.permute.xlu0 %1220
      %1222 = vrot.lane.b32.xlu0 %v1160, 1
      %v1223 = vpop.permute.xlu0 %1222
      %1224 = vrot.lane.b32.xlu0 %v1166, 1
      %v1225 = vpop.permute.xlu0 %1224
      %1226 = vrot.lane.b32.xlu0 %v1150, 1
      %v1227 = vpop.permute.xlu0 %1226
      %1228 = vrot.lane.b32.xlu0 %v1156, 1
      %v1229 = vpop.permute.xlu0 %1228
      %1230 = vrot.lane.b32.xlu0 %v1162, 1
      %v1231 = vpop.permute.xlu0 %1230
      %1232 = vrot.lane.b32.xlu0 %v1168, 1
      %v1233 = vpop.permute.xlu0 %1232
      %vm1234 = vcmp.lt.s32.totalorder %v916, 1
      %v1235 = vsel %vm1234, %v1219, %v1227
      %v1236 = vsel %vm1234, %v1221, %v1229
      %v1237 = vsel %vm1234, %v1223, %v1231
      %v1238 = vsel %vm1234, %v1225, %v1233
      %v1239 = vsel %vm1234, %v1227, %v1219
      %v1240 = vsel %vm1234, %v1229, %v1221
      %v1241 = vsel %vm1234, %v1231, %v1223
      %v1242 = vsel %vm1234, %v1233, %v1225
      %v1243 = vmul.f32 %v1239, %v958
      %v1244 = vmul.f32 %v1235, %v959
      %v1245 = vmul.f32 %v1240, %v958
      %v1246 = vmul.f32 %v1236, %v959
      %v1247 = vmul.f32 %v1241, %v958
      %v1248 = vmul.f32 %v1237, %v959
      %v1249 = vmul.f32 %v1242, %v958
      %v1250 = vmul.f32 %v1238, %v959
      %v1251 = vadd.f32 %v1243, %v1172
      %v1252 = vadd.f32 %v1244, %v1174
      %v1253 = vadd.f32 %v1245, %v1178
      %v1254 = vadd.f32 %v1246, %v1180
      %v1255 = vadd.f32 %v1247, %v1184
      %v1256 = vadd.f32 %v1248, %v1186
      %v1257 = vadd.f32 %v1249, %v1190
      %v1258 = vadd.f32 %v1250, %v1192
      %1259 = vrot.lane.b32.xlu0 %v1196, 127
      %v1260 = vpop.permute.xlu0 %1259
      %1261 = vrot.lane.b32.xlu0 %v1202, 127
      %v1262 = vpop.permute.xlu0 %1261
      %1263 = vrot.lane.b32.xlu0 %v1208, 127
      %v1264 = vpop.permute.xlu0 %1263
      %1265 = vrot.lane.b32.xlu0 %v1214, 127
      %v1266 = vpop.permute.xlu0 %1265
      %1267 = vrot.lane.b32.xlu0 %v1198, 127
      %v1268 = vpop.permute.xlu0 %1267
      %1269 = vrot.lane.b32.xlu0 %v1204, 127
      %v1270 = vpop.permute.xlu0 %1269
      %1271 = vrot.lane.b32.xlu0 %v1210, 127
      %v1272 = vpop.permute.xlu0 %1271
      %1273 = vrot.lane.b32.xlu0 %v1216, 127
      %v1274 = vpop.permute.xlu0 %1273
      %vm1275 = vcmp.lt.s32.totalorder %v916, 127
      %v1276 = vsel %vm1275, %v1260, %v1268
      %v1277 = vsel %vm1275, %v1262, %v1270
      %v1278 = vsel %vm1275, %v1264, %v1272
      %v1279 = vsel %vm1275, %v1266, %v1274
      %v1280 = vsel %vm1275, %v1268, %v1260
      %v1281 = vsel %vm1275, %v1270, %v1262
      %v1282 = vsel %vm1275, %v1272, %v1264
      %v1283 = vsel %vm1275, %v1274, %v1266
      %v1284 = vmul.f32 %v1276, %v964
      %v1285 = vmul.f32 %v1280, %v965
      %v1286 = vmul.f32 %v1277, %v964
      %v1287 = vmul.f32 %v1281, %v965
      %v1288 = vmul.f32 %v1278, %v964
      %v1289 = vmul.f32 %v1282, %v965
      %v1290 = vmul.f32 %v1279, %v964
      %v1291 = vmul.f32 %v1283, %v965
      %v1292 = vadd.f32 %v1251, %v1284
      %v1293 = vadd.f32 %v1252, %v1285
      %v1294 = vadd.f32 %v1253, %v1286
      %v1295 = vadd.f32 %v1254, %v1287
      %v1296 = vadd.f32 %v1255, %v1288
      %v1297 = vadd.f32 %v1256, %v1289
      %v1298 = vadd.f32 %v1257, %v1290
      %v1299 = vadd.f32 %v1258, %v1291
      %v1300 = vld [vmem:[%s11] sm:$0xff]
      %v1301 = vld [vmem:[%s11 + $0x8] sm:$0xff]
      %v1302 = vld [vmem:[%s11 + $0x10] sm:$0xff]
      %v1303 = vld [vmem:[%s11 + $0x18] sm:$0xff]
      %1305 = vset.pattern.permute.xlu0 0
      %1306 = vperm.xlu0 %1305, %v1300
      %v1307 = vpop.permute.xlu0 %1306
      %1310 = vset.pattern.permute.xlu0 0
      %1311 = vperm.xlu0 %1310, %v1301
      %v1312 = vpop.permute.xlu0 %1311
      %1315 = vset.pattern.permute.xlu0 0
      %1316 = vperm.xlu0 %1315, %v1302
      %v1317 = vpop.permute.xlu0 %1316
      %1320 = vset.pattern.permute.xlu0 0
      %1321 = vperm.xlu0 %1320, %v1303
      %v1322 = vpop.permute.xlu0 %1321
      %v1324 = vmul.f32 %v1292, %v1307
      %v1325 = vmul.f32 %v1293, %v1307
      %v1326 = vmul.f32 %v1294, %v1312
      %v1327 = vmul.f32 %v1295, %v1312
      %v1328 = vmul.f32 %v1296, %v1317
      %v1329 = vmul.f32 %v1297, %v1317
      %v1330 = vmul.f32 %v1298, %v1322
      %v1331 = vmul.f32 %v1299, %v1322
      %v1332 = vld [vmem:[%s12] sm:$0xff]
      %v1333 = vld [vmem:[%s12 + $0x8] sm:$0xff]
      %v1334 = vld [vmem:[%s12 + $0x10] sm:$0xff]
      %v1335 = vld [vmem:[%s12 + $0x18] sm:$0xff]
      %1337 = vset.pattern.permute.xlu0 0
      %1338 = vperm.xlu0 %1337, %v1332
      %v1339 = vpop.permute.xlu0 %1338
      %1342 = vset.pattern.permute.xlu0 0
      %1343 = vperm.xlu0 %1342, %v1333
      %v1344 = vpop.permute.xlu0 %1343
      %1347 = vset.pattern.permute.xlu0 0
      %1348 = vperm.xlu0 %1347, %v1334
      %v1349 = vpop.permute.xlu0 %1348
      %1352 = vset.pattern.permute.xlu0 0
      %1353 = vperm.xlu0 %1352, %v1335
      %v1354 = vpop.permute.xlu0 %1353
      %v1356 = vadd.f32 %v1324, %v1339
      %v1357 = vadd.f32 %v1325, %v1339
      %v1358 = vadd.f32 %v1326, %v1344
      %v1359 = vadd.f32 %v1327, %v1344
      %v1360 = vadd.f32 %v1328, %v1349
      %v1361 = vadd.f32 %v1329, %v1349
      %v1362 = vadd.f32 %v1330, %v1354
      %v1363 = vadd.f32 %v1331, %v1354
      %1364 = vst [vmem:[%s495] sm:$0xff] %v1356
      %1365 = vst [vmem:[%s495 + $0x8] sm:$0xff] %v1357
      %1366 = vst [vmem:[%s495 + $0x10] sm:$0xff] %v1358
      %1367 = vst [vmem:[%s495 + $0x18] sm:$0xff] %v1359
      %1368 = vst [vmem:[%s495 + $0x20] sm:$0xff] %v1360
      %1369 = vst [vmem:[%s495 + $0x28] sm:$0xff] %v1361
      %1370 = vst [vmem:[%s495 + $0x30] sm:$0xff] %v1362
      %1371 = vst [vmem:[%s495 + $0x38] sm:$0xff] %v1363
      %p1372 = scmp.lt.s32.totalorder %s26, 1
      %s1373 = scalar_select %p1372, %s26, 1
      %s1374 = smul.addr %s1373, 8
      %s1375 = smul.addr %s1374, 8
      %s1376 = scalar_lea.vmem %s13, %s1375
      %p1377 = scmp.lt.s32.totalorder %s26, 1
      %s1378 = scalar_select %p1377, %s26, 1
      %s1379 = smul.addr %s1378, 8
      %s1380 = smul.addr %s1379, 8
      %s1381 = scalar_lea.vmem %s14, %s1380
      // Predicated region
      $region73: #{sk_forward.1} parent=71 // pred_check
        %p1382 = pneg %p327
      $region74: #{sk_forward.1} parent=71 // pred_check_branch
        %1384 = sbr.rel (%p1382) target = $region76
      $region75: #{sk_forward.1} parent=71 // pred_region
        _
      $region76: #{sk_forward.1} parent=71 // pred_fallthru
        _
      // Predicated region
      $region77: #{sk_forward.1} parent=71 // pred_check
        %p1385 = pneg %p353
      $region78: #{sk_forward.1} parent=71 // pred_check_branch
        %1387 = sbr.rel (%p1385) target = $region80
      $region79: #{sk_forward.1} parent=71 // pred_region
        _
      $region80: #{sk_forward.1} parent=71 // pred_fallthru
        _
    $region72: #{sk_forward.1} parent=5 // pred_fallthru
      _
    %p1388 = scmp.le.s32.totalorder 2, %s21
    // Predicated region
    $region81: #{sk_forward.1} parent=5 // pred_check
      %p1389 = pneg %p1388
    $region82: #{sk_forward.1} parent=5 // pred_check_branch
      %1391 = sbr.rel (%p1389) target = $region84
    $region83: #{sk_forward.1} parent=5 // pred_region
      %s1392 = ssub.s32 %s21, 2
      // Predicated region
      $region85: #{sk_forward.1} parent=83 // pred_check
        %p1393 = pneg %p333
      $region86: #{sk_forward.1} parent=83 // pred_check_branch
        %1395 = sbr.rel (%p1393) target = $region88
      $region87: #{sk_forward.1} parent=83 // pred_region
        %p1396 = scmp.lt.s32.totalorder %s27, 1
        %s1397 = scalar_select %p1396, %s27, 1
        %s1398 = smul.addr %s1397, 8
        %s1399 = smul.addr %s1398, 8
        %s1400 = scalar_lea.vmem %s13, %s1399
      $region88: #{sk_forward.1} parent=83 // pred_fallthru
        _
      // Predicated region
      $region89: #{sk_forward.1} parent=83 // pred_check
        %p1401 = pneg %p359
      $region90: #{sk_forward.1} parent=83 // pred_check_branch
        %1403 = sbr.rel (%p1401) target = $region92
      $region91: #{sk_forward.1} parent=83 // pred_region
        %p1404 = scmp.lt.s32.totalorder %s27, 1
        %s1405 = scalar_select %p1404, %s27, 1
        %s1406 = smul.addr %s1405, 8
        %s1407 = smul.addr %s1406, 8
        %s1408 = scalar_lea.vmem %s14, %s1407
      $region92: #{sk_forward.1} parent=83 // pred_fallthru
        _
    $region84: #{sk_forward.1} parent=5 // pred_fallthru
      _
  $region6: #{sk_forward.1} parent=0 // loop_footer
    %s25 = sadd.s32 1, %s21
  $region7: #{sk_forward.1} parent=0 // loop_footer_branch
    %20 = sbr.rel target = $region3
  $region8: #{sk_forward.1} parent=0 // loop_exit
    _

</llo_original>
